<compile_context>
chip_gen: v6e
topology: v6e:2x2x1
jax: 0.10.0
libtpu: 0.0.40
codegen_flags: <defaults>
</compile_context>

<pallas_src>
import functools
import math

import jax
import jax.numpy as jnp
import numpy as np
from jax.experimental import pallas as pl
from jax.experimental.pallas import tpu as pltpu

_INV_SQRT2 = 0.7071067811865476


def _gelu(v):
    # exact erf-based GELU -- matches torch.nn.functional.gelu default
    return 0.5 * v * (1.0 + jax.lax.erf(v * _INV_SQRT2))


def routing_kernel(x_ref, m_ref,
                   wcap_ref, bcap_ref,
                   wcat_ref, bpre_ref, bpost_ref,
                   wa_ref, bal_ref,
                   w2_ref, b2_ref,
                   gblk_ref,
                   out_ref, *, b_tile, s, jh, iters):
    bs = b_tile * s
    x2 = x_ref[...].reshape(bs, x_ref.shape[-1])              # (B*S, D)
    m3 = m_ref[...]                                           # (B, S, 1)
    m2 = m3.reshape(bs, 1)                                    # (B*S, 1)
    attn = jnp.where(m3 == 0.0, jnp.float32(-jnp.inf), jnp.float32(0.0))

    # primary capsule projection: GELU(x @ Wcap + Bcap)
    # TODO(synk): caps is lane-sparse (in_dim of 128 lanes) through the erf GELU;
    # only worth restructuring if VALU ever shows up as the saturated slot.
    caps = _gelu(jnp.dot(x2, wcap_ref[...], preferred_element_type=jnp.float32)
                 + bcap_ref[...])                             # (B*S, in_dim)

    # One fused matmul produces [votes | fe1(votes) | fn1(votes) | score] as
    # lane-adjacent 128-wide slices.  The per-row mask commutes with those
    # right-matmuls, so it is applied once; biases the torch module adds after
    # the mask live in bpost.
    ycat = (jnp.dot(caps, wcat_ref[...], preferred_element_type=jnp.float32)
            + bpre_ref[...]) * m2 + bpost_ref[...]            # (B*S, 4*JH)

    votes = ycat[:, 0 * jh:1 * jh].reshape(b_tile, s, jh)
    fe_votes = ycat[:, 1 * jh:2 * jh].reshape(b_tile, s, jh)
    fn_votes = ycat[:, 2 * jh:3 * jh].reshape(b_tile, s, jh)
    bij = ycat[:, 3 * jh:4 * jh].reshape(b_tile, s, jh)       # score, lane-replicated per capsule

    logits = bij * m3 + attn
    mx = jnp.max(logits, axis=1, keepdims=True)
    e = jnp.exp(logits - mx)
    # exact reciprocal (approx=True would move it fully onto the EUP slot)
    inv_den = pl.reciprocal(jnp.sum(e, axis=1, keepdims=True), approx=False)
    aij = e * inv_den                                         # (B, S, JH)

    gblk = gblk_ref[...]
    vj = jnp.zeros((b_tile, jh), jnp.float32)
    for i in range(iters):                                    # iters is small & static
        agg = _gelu(jnp.sum(aij * votes, axis=1))             # (B, JH)
        if i == 0:
            vj = agg
        else:
            alpha = jax.nn.sigmoid(
                jnp.dot(agg, wa_ref[...], preferred_element_type=jnp.float32)
                + bal_ref[...])                               # (B, JH), per-capsule replicated
            vj = alpha * agg + (1.0 - alpha) * vj
        if i != iters - 1:
            # one MXU call yields both fe2(vj) and fn2(vj), lane-concatenated
            fefn2 = (jnp.dot(vj, w2_ref[...], preferred_element_type=jnp.float32)
                     + b2_ref[...])                           # (B, 2*JH)
            fe2_vj = fefn2[:, :jh].reshape(b_tile, 1, jh)
            fn2_vj = fefn2[:, jh:].reshape(b_tile, 1, jh)
            ef = (fe_votes * fe2_vj).reshape(bs, jh)
            af = jnp.abs(fn_votes - fn2_vj).reshape(bs, jh)
            # group-sums over out_dim, replicated back across each group's lanes.
            # Kept as two dots: stacking ef/af along M needs a VMEM round-trip
            # that costs more than the single saved MXU weight push at large bs.
            E = jnp.dot(ef, gblk, preferred_element_type=jnp.float32).reshape(b_tile, s, jh)
            M = -jnp.dot(af, gblk, preferred_element_type=jnp.float32).reshape(b_tile, s, jh)
            aij = jnp.tanh(E) * jax.nn.sigmoid(M * m3 + attn)

    out_ref[...] = vj                                         # lane-dense (B, JH) store


def _pick_batch_tile(n, s):
    """Target ~1024 (512-2048) B*S rows per grid step.

    Fixed per-grid-step pipeline cost is ~0.35us and every matmul's M dim is
    b_tile*S (or b_tile), so small steps are overhead-bound.  Only split the
    grid when each step keeps >= 256 rows; prefer an even step count so both
    v7x TensorCores get work.  batch_tile must divide N and, when < N, be a
    multiple of 8 so the (batch_tile, 128) output block stays sublane-aligned
    (unmasked vst).
    """
    target_rows, min_rows, max_rows = 1024, 256, 2048
    if n * s <= max_rows:
        return n                                   # one well-filled step
    cands = [d for d in range(1, n + 1)
             if n % d == 0 and (d == n or d % 8 == 0)]
    good = [d for d in cands if min_rows <= d * s <= max_rows] or cands
    even = [d for d in good if (n // d) % 2 == 0] or good
    return min(even, key=lambda d: abs(d * s - target_rows))


def _hdot(a, b):
    # wrapper-side weight folding must be exact so the kernel matches the
    # "highest"-precision reference within 2e-4
    return jnp.dot(a, b, precision=jax.lax.Precision.HIGHEST)


def routing_forward(x, mask, p, *, iters=3, batch_tile=None):
    N, S, D = x.shape
    n_out, in_dim, out_dim = p["Wvotes"].shape
    jh = n_out * out_dim
    f32 = jnp.float32

    x = x.astype(f32)
    mask = mask.astype(f32)

    # Pad S to a multiple of 8 with masked-out capsules so in-kernel reshapes
    # between (b_tile, S, .) and (b_tile*S, .) never cross an (8,128) tile.
    Sp = -(-S // 8) * 8
    if Sp != S:
        x = jnp.pad(x, ((0, 0), (0, Sp - S), (0, 0)))
        mask = jnp.pad(mask, ((0, 0), (0, Sp - S)))

    if batch_tile is None:
        batch_tile = _pick_batch_tile(N, Sp)
    assert N % batch_tile == 0, "batch_tile must divide N"
    assert batch_tile == N or batch_tile % 8 == 0

    mask3 = mask.reshape(N, Sp, 1)
    bs = batch_tile * Sp

    # --- wrapper-side weight repacking into lane-dense / block-diagonal form ---
    eye = jnp.eye(n_out, dtype=f32)
    blockdiag = lambda w: jnp.kron(eye, w.astype(f32))                  # (JH, JH)
    tile_b = lambda b: jnp.tile(b.astype(f32).reshape(1, out_dim), (1, n_out))
    ones_h = jnp.ones((1, out_dim), f32)

    wv_flat = jnp.transpose(p["Wvotes"], (1, 0, 2)).reshape(in_dim, jh).astype(f32)
    bv_flat = p["Bvotes"].reshape(1, jh).astype(f32)
    fe1_bd, fn1_bd = blockdiag(p["w_fe1"]), blockdiag(p["w_fn1"])
    ws_exp = jnp.kron(eye, _hdot(p["w_score"].astype(f32).T, ones_h))   # score, lane-replicated
    wa_exp = jnp.kron(eye, _hdot(p["w_alpha"].astype(f32).T, ones_h))   # alpha, lane-replicated

    # Fold fe1/fn1/score through Wvotes: the mask is a per-row scalar so
    # (v*m) @ W == (v @ W) * m, letting a single K=in_dim matmul from `caps`
    # produce votes, fe1(votes), fn1(votes) and the score logits.
    wcat = jnp.concatenate(
        [wv_flat, _hdot(wv_flat, fe1_bd), _hdot(wv_flat, fn1_bd), _hdot(wv_flat, ws_exp)],
        axis=1)                                                          # (in_dim, 4*JH)
    bpre = jnp.concatenate(
        [bv_flat, _hdot(bv_flat, fe1_bd), _hdot(bv_flat, fn1_bd), _hdot(bv_flat, ws_exp)],
        axis=1)                                                          # applied before mask
    bpost = jnp.concatenate(
        [jnp.zeros((1, jh), f32), tile_b(p["b_fe1"]), tile_b(p["b_fn1"]),
         jnp.full((1, jh), p["b_score"][0, 0], f32)], axis=1)            # applied after mask

    w2cat = jnp.concatenate([blockdiag(p["w_fe2"]), blockdiag(p["w_fn2"])], axis=1)
    b2cat = jnp.concatenate([tile_b(p["b_fe2"]), tile_b(p["b_fn2"])], axis=1)
    bal_row = jnp.full((1, jh), p["b_alpha"][0, 0], f32)
    gblk = jnp.kron(eye, jnp.ones((out_dim, out_dim), f32))              # group-sum matrix

    bm3 = lambda b: (b, 0, 0)   # batch-blocked 3-D arrays
    f2 = lambda b: (0, 0)       # grid-constant 2-D weights (same block -> no re-DMA)

    in_specs = [
        pl.BlockSpec((batch_tile, Sp, D), bm3),     # x
        pl.BlockSpec((batch_tile, Sp, 1), bm3),     # mask
        pl.BlockSpec((D, in_dim), f2),              # Wcap
        pl.BlockSpec((1, in_dim), f2),              # Bcap
        pl.BlockSpec((in_dim, 4 * jh), f2),         # Wcat = [votes|fe1|fn1|score]
        pl.BlockSpec((1, 4 * jh), f2),              # pre-mask bias
        pl.BlockSpec((1, 4 * jh), f2),              # post-mask bias
        pl.BlockSpec((jh, jh), f2),                 # alpha_score (block-replicated)
        pl.BlockSpec((1, jh), f2),                  # alpha bias
        pl.BlockSpec((jh, 2 * jh), f2),             # [fe2 | fn2] block-diag
        pl.BlockSpec((1, 2 * jh), f2),              # [b_fe2 | b_fn2]
        pl.BlockSpec((jh, jh), f2),                 # group-sum matrix
    ]

    # VMEM budget: ~14 live (bs,128)-f32 intermediates plus the (bs,4*jh) fused
    # tile ~= bs * 10-20 KiB; keep >= 32 MiB (lifts v5e's 16 MiB scoped default)
    # and <= 48 MiB (under v7x's 64 MiB physical VMEM).
    vmem_bytes = int(min(48 * 1024 * 1024, max(32 * 1024 * 1024, bs * 20 * 1024)))

    kernel = functools.partial(routing_kernel, b_tile=batch_tile, s=Sp, jh=jh,
                               iters=iters)
    out = pl.pallas_call(
        kernel,
        out_shape=jax.ShapeDtypeStruct((N, jh), jnp.float32),
        grid_spec=pltpu.PrefetchScalarGridSpec(
            num_scalar_prefetch=0,
            grid=(N // batch_tile,),
            in_specs=in_specs,
            out_specs=pl.BlockSpec((batch_tile, jh), lambda b: (b, 0)),
        ),
        compiler_params=pltpu.CompilerParams(
            dimension_semantics=("parallel",),
            vmem_limit_bytes=vmem_bytes),
    )(x, mask3,
      p["Wcap"], p["Bcap"], wcat, bpre, bpost,
      wa_exp, bal_row, w2cat, b2cat, gblk)
    return out.reshape(N, n_out, out_dim)


def routing_reference(x, mask, p, iters=3):
    """Pure-JAX mirror of the torch forward (n_in_param == 1)."""
    N, S, D = x.shape
    n_out, in_dim, out_dim = p["Wvotes"].shape
    m = mask.reshape(N, S, 1, 1).astype(jnp.float32)
    attn = jnp.where(m == 0.0, jnp.float32(-jnp.inf), jnp.float32(0.0))

    caps = _gelu(jnp.einsum('nsd,dh->nsh', x, p["Wcap"]) + p["Bcap"])          # (N,S,in_dim)
    votes = (jnp.einsum('nsd,jdh->nsjh', caps, p["Wvotes"])
             + p["Bvotes"][:, 0, :][None, None]) * m                           # (N,S,J,H)

    fn_v = votes @ p["w_fn1"] + p["b_fn1"]
    fe_v = votes @ p["w_fe1"] + p["b_fe1"]
    bij = jnp.sum(votes * p["w_score"], axis=-1, keepdims=True) + p["b_score"]
    logits = bij * m + attn
    mx = jnp.max(logits, axis=1, keepdims=True)
    e = jnp.exp(logits - mx)
    aij = e / jnp.sum(e, axis=1, keepdims=True)

    vj = None
    for i in range(iters):
        agg = _gelu(jnp.sum(aij * votes, axis=1))                              # (N,J,H)
        if i == 0:
            vj = agg
        else:
            alpha = jax.nn.sigmoid(
                jnp.sum(agg * p["w_alpha"], axis=-1, keepdims=True) + p["b_alpha"])
            vj = alpha * agg + (1.0 - alpha) * vj
        if i != iters - 1:
            vj_ = vj[:, None]                                                  # (N,1,J,H)
            fe2v = vj_ @ p["w_fe2"] + p["b_fe2"]
            fn2v = vj_ @ p["w_fn2"] + p["b_fn2"]
            E = jnp.sum(fe_v * fe2v, axis=-1, keepdims=True)
            M = -jnp.sum(jnp.abs(fn_v - fn2v), axis=-1, keepdims=True)
            aij = jnp.tanh(E) * jax.nn.sigmoid(M * m + attn)
    return vj


def init_params(key, D, in_dim, n_out, out_dim):
    ks = jax.random.split(key, 8)

    def xavier(k, shape, fan_in, fan_out):
        b = math.sqrt(6.0 / (fan_in + fan_out))
        return jax.random.uniform(k, shape, jnp.float32, -b, b)

    # Linear weights are stored pre-transposed ((in, out)) so kernels do y = x @ W + b.
    # TODO(synk): torch Linear biases default to non-zero uniform init; zeros used here (synthetic init).
    p = {
        "Wcap": xavier(ks[0], (D, in_dim), D, in_dim),
        "Bcap": jnp.zeros((1, in_dim), jnp.float32),
        "Wvotes": xavier(ks[1], (n_out, in_dim, out_dim), in_dim, out_dim),
        "Bvotes": jnp.zeros((n_out, 1, out_dim), jnp.float32),
        "w_score": xavier(ks[2], (1, out_dim), out_dim, 1),
        "b_score": jnp.zeros((1, 1), jnp.float32),
        "w_alpha": xavier(ks[3], (1, out_dim), out_dim, 1),
        "b_alpha": jnp.zeros((1, 1), jnp.float32),
    }
    for name, k in (("fe1", ks[4]), ("fe2", ks[5]), ("fn1", ks[6]), ("fn2", ks[7])):
        p[f"w_{name}"] = xavier(k, (out_dim, out_dim), out_dim, out_dim)
        p[f"b_{name}"] = jnp.zeros((1, out_dim), jnp.float32)
    return p


if __name__ == "__main__":
    N, S, D = 2, 8, 16                    # batch, runtime input capsules (n_in in forward), D
    in_dim, n_out, out_dim = 16, 4, 32    # n_out*out_dim = 128 -> lane-dense

    key = jax.random.PRNGKey(0)
    kx, kp = jax.random.split(key)
    x = jax.random.normal(kx, (N, S, D), jnp.float32)
    mask = jnp.ones((N, S), jnp.float32)
    mask = mask.at[1, 5:].set(0.0).at[0, 7].set(0.0)   # some padded capsules

    params = init_params(kp, D, in_dim, n_out, out_dim)

    out = routing_forward(x, mask, params, iters=3)
    out = jax.block_until_ready(out)

    with jax.default_matmul_precision("highest"):
        ref = routing_reference(x, mask, params, iters=3)
    np.testing.assert_allclose(np.asarray(out), np.asarray(ref), atol=2e-4, rtol=2e-4)
    print("KERNEL_OK")
</pallas_src>

<mosaic_0001>
module attributes {stable_mosaic.version = 11 : i64} {
  func.func @routing_kernel(%arg0: i32, %arg1: memref<2x8x16xf32, #tpu.memory_space<vmem>>, %arg2: memref<2x8x1xf32, #tpu.memory_space<vmem>>, %arg3: memref<16x16xf32, #tpu.memory_space<vmem>>, %arg4: memref<1x16xf32, #tpu.memory_space<vmem>>, %arg5: memref<16x512xf32, #tpu.memory_space<vmem>>, %arg6: memref<1x512xf32, #tpu.memory_space<vmem>>, %arg7: memref<1x512xf32, #tpu.memory_space<vmem>>, %arg8: memref<128x128xf32, #tpu.memory_space<vmem>>, %arg9: memref<1x128xf32, #tpu.memory_space<vmem>>, %arg10: memref<128x256xf32, #tpu.memory_space<vmem>>, %arg11: memref<1x256xf32, #tpu.memory_space<vmem>>, %arg12: memref<128x128xf32, #tpu.memory_space<vmem>>, %arg13: memref<2x128xf32, #tpu.memory_space<vmem>>) attributes {dimension_semantics = [#tpu.dimension_semantics<parallel>], iteration_bounds = array<i64: 1>, scalar_prefetch = 0 : i64, scratch_operands = 0 : i64, tpu.core_type = #tpu.core_type<tc>, window_params = [{transform_indices = @transform_0, window_bounds = array<i64: 2, 8, 16>}, {transform_indices = @transform_1, window_bounds = array<i64: 2, 8, 1>}, {pipeline_mode = #tpu.pipeline_mode<synchronous>, transform_indices = @transform_2, window_bounds = array<i64: 16, 16>}, {pipeline_mode = #tpu.pipeline_mode<synchronous>, transform_indices = @transform_3, window_bounds = array<i64: 1, 16>}, {pipeline_mode = #tpu.pipeline_mode<synchronous>, transform_indices = @transform_4, window_bounds = array<i64: 16, 512>}, {pipeline_mode = #tpu.pipeline_mode<synchronous>, transform_indices = @transform_5, window_bounds = array<i64: 1, 512>}, {pipeline_mode = #tpu.pipeline_mode<synchronous>, transform_indices = @transform_6, window_bounds = array<i64: 1, 512>}, {pipeline_mode = #tpu.pipeline_mode<synchronous>, transform_indices = @transform_7, window_bounds = array<i64: 128, 128>}, {pipeline_mode = #tpu.pipeline_mode<synchronous>, transform_indices = @transform_8, window_bounds = array<i64: 1, 128>}, {pipeline_mode = #tpu.pipeline_mode<synchronous>, transform_indices = @transform_9, window_bounds = array<i64: 128, 256>}, {pipeline_mode = #tpu.pipeline_mode<synchronous>, transform_indices = @transform_10, window_bounds = array<i64: 1, 256>}, {pipeline_mode = #tpu.pipeline_mode<synchronous>, transform_indices = @transform_11, window_bounds = array<i64: 128, 128>}, {transform_indices = @transform_12, window_bounds = array<i64: 2, 128>}]} {
    %c0 = arith.constant 0 : index
    %c0_0 = arith.constant 0 : index
    %c0_1 = arith.constant 0 : index
    %0 = vector.load %arg1[%c0, %c0_0, %c0_1] : memref<2x8x16xf32, #tpu.memory_space<vmem>>, vector<2x8x16xf32>
    %1 = vector.shape_cast %0 : vector<2x8x16xf32> to vector<16x16xf32>
    %c0_2 = arith.constant 0 : index
    %c0_3 = arith.constant 0 : index
    %c0_4 = arith.constant 0 : index
    %2 = vector.load %arg2[%c0_2, %c0_3, %c0_4] : memref<2x8x1xf32, #tpu.memory_space<vmem>>, vector<2x8x1xf32>
    %3 = vector.shape_cast %2 : vector<2x8x1xf32> to vector<16x1xf32>
    %cst = arith.constant 0.000000e+00 : f32
    %4 = vector.broadcast %cst : f32 to vector<2x8x1xf32>
    %5 = arith.cmpf oeq, %2, %4 : vector<2x8x1xf32>
    %cst_5 = arith.constant 0xFF800000 : f32
    %cst_6 = arith.constant 0.000000e+00 : f32
    %6 = vector.broadcast %cst_5 : f32 to vector<2x8x1xf32>
    %7 = vector.broadcast %cst_6 : f32 to vector<2x8x1xf32>
    %8 = arith.select %5, %6, %7 : vector<2x8x1xi1>, vector<2x8x1xf32>
    %c0_7 = arith.constant 0 : index
    %c0_8 = arith.constant 0 : index
    %9 = vector.load %arg3[%c0_7, %c0_8] : memref<16x16xf32, #tpu.memory_space<vmem>>, vector<16x16xf32>
    %cst_9 = arith.constant dense<0.000000e+00> : vector<16x16xf32>
    %10 = tpu.matmul %1, %9, %cst_9 {dimension_numbers = #tpu.dot_dimension_numbers<[1], [0], [0], [1], [0, 0, 1, 1], [], []>} : vector<16x16xf32>, vector<16x16xf32>, vector<16x16xf32> -> vector<16x16xf32>
    %c0_10 = arith.constant 0 : index
    %c0_11 = arith.constant 0 : index
    %11 = vector.load %arg4[%c0_10, %c0_11] : memref<1x16xf32, #tpu.memory_space<vmem>>, vector<1x16xf32>
    %12 = vector.broadcast %11 : vector<1x16xf32> to vector<16x16xf32>
    %13 = arith.addf %10, %12 : vector<16x16xf32>
    %cst_12 = arith.constant 5.000000e-01 : f32
    %14 = vector.broadcast %cst_12 : f32 to vector<16x16xf32>
    %15 = arith.mulf %14, %13 : vector<16x16xf32>
    %cst_13 = arith.constant 0.707106769 : f32
    %16 = vector.broadcast %cst_13 : f32 to vector<16x16xf32>
    %17 = arith.mulf %13, %16 : vector<16x16xf32>
    %18 = math.erf %17 : vector<16x16xf32>
    %cst_14 = arith.constant 1.000000e+00 : f32
    %19 = vector.broadcast %cst_14 : f32 to vector<16x16xf32>
    %20 = arith.addf %19, %18 : vector<16x16xf32>
    %21 = arith.mulf %15, %20 : vector<16x16xf32>
    %c0_15 = arith.constant 0 : index
    %c0_16 = arith.constant 0 : index
    %22 = vector.load %arg5[%c0_15, %c0_16] : memref<16x512xf32, #tpu.memory_space<vmem>>, vector<16x512xf32>
    %cst_17 = arith.constant dense<0.000000e+00> : vector<16x512xf32>
    %23 = tpu.matmul %21, %22, %cst_17 {dimension_numbers = #tpu.dot_dimension_numbers<[1], [0], [0], [1], [0, 0, 1, 1], [], []>} : vector<16x16xf32>, vector<16x512xf32>, vector<16x512xf32> -> vector<16x512xf32>
    %c0_18 = arith.constant 0 : index
    %c0_19 = arith.constant 0 : index
    %24 = vector.load %arg6[%c0_18, %c0_19] : memref<1x512xf32, #tpu.memory_space<vmem>>, vector<1x512xf32>
    %25 = vector.broadcast %24 : vector<1x512xf32> to vector<16x512xf32>
    %26 = arith.addf %23, %25 : vector<16x512xf32>
    %27 = vector.broadcast %3 : vector<16x1xf32> to vector<16x512xf32>
    %28 = arith.mulf %26, %27 : vector<16x512xf32>
    %c0_20 = arith.constant 0 : index
    %c0_21 = arith.constant 0 : index
    %29 = vector.load %arg7[%c0_20, %c0_21] : memref<1x512xf32, #tpu.memory_space<vmem>>, vector<1x512xf32>
    %30 = vector.broadcast %29 : vector<1x512xf32> to vector<16x512xf32>
    %31 = arith.addf %28, %30 : vector<16x512xf32>
    %32 = vector.extract_strided_slice %31 {offsets = [0, 0], sizes = [16, 128], strides = [1, 1]} : vector<16x512xf32> to vector<16x128xf32>
    %33 = vector.shape_cast %32 : vector<16x128xf32> to vector<2x8x128xf32>
    %34 = vector.extract_strided_slice %31 {offsets = [0, 128], sizes = [16, 128], strides = [1, 1]} : vector<16x512xf32> to vector<16x128xf32>
    %35 = vector.shape_cast %34 : vector<16x128xf32> to vector<2x8x128xf32>
    %36 = vector.extract_strided_slice %31 {offsets = [0, 256], sizes = [16, 128], strides = [1, 1]} : vector<16x512xf32> to vector<16x128xf32>
    %37 = vector.shape_cast %36 : vector<16x128xf32> to vector<2x8x128xf32>
    %38 = vector.extract_strided_slice %31 {offsets = [0, 384], sizes = [16, 128], strides = [1, 1]} : vector<16x512xf32> to vector<16x128xf32>
    %39 = vector.shape_cast %38 : vector<16x128xf32> to vector<2x8x128xf32>
    %40 = vector.broadcast %2 : vector<2x8x1xf32> to vector<2x8x128xf32>
    %41 = arith.mulf %39, %40 : vector<2x8x128xf32>
    %42 = vector.broadcast %8 : vector<2x8x1xf32> to vector<2x8x128xf32>
    %43 = arith.addf %41, %42 : vector<2x8x128xf32>
    %cst_22 = arith.constant dense<0xFF800000> : vector<2x128xf32>
    %44 = vector.multi_reduction <maximumf>, %43, %cst_22 [1] : vector<2x8x128xf32> to vector<2x128xf32>
    %45 = vector.shape_cast %44 : vector<2x128xf32> to vector<2x1x128xf32>
    %46 = vector.broadcast %45 : vector<2x1x128xf32> to vector<2x8x128xf32>
    %47 = arith.subf %43, %46 : vector<2x8x128xf32>
    %48 = math.exp %47 : vector<2x8x128xf32>
    %cst_23 = arith.constant dense<0.000000e+00> : vector<2x128xf32>
    %49 = vector.multi_reduction <add>, %48, %cst_23 [1] : vector<2x8x128xf32> to vector<2x128xf32>
    %50 = vector.shape_cast %49 : vector<2x128xf32> to vector<2x1x128xf32>
    %51 = tpu.reciprocal %50 : vector<2x1x128xf32> -> vector<2x1x128xf32>
    %52 = vector.broadcast %51 : vector<2x1x128xf32> to vector<2x8x128xf32>
    %53 = arith.mulf %48, %52 : vector<2x8x128xf32>
    %c0_24 = arith.constant 0 : index
    %c0_25 = arith.constant 0 : index
    %54 = vector.load %arg12[%c0_24, %c0_25] : memref<128x128xf32, #tpu.memory_space<vmem>>, vector<128x128xf32>
    %55 = arith.mulf %53, %33 : vector<2x8x128xf32>
    %cst_26 = arith.constant dense<0.000000e+00> : vector<2x128xf32>
    %56 = vector.multi_reduction <add>, %55, %cst_26 [1] : vector<2x8x128xf32> to vector<2x128xf32>
    %cst_27 = arith.constant 5.000000e-01 : f32
    %57 = vector.broadcast %cst_27 : f32 to vector<2x128xf32>
    %58 = arith.mulf %57, %56 : vector<2x128xf32>
    %cst_28 = arith.constant 0.707106769 : f32
    %59 = vector.broadcast %cst_28 : f32 to vector<2x128xf32>
    %60 = arith.mulf %56, %59 : vector<2x128xf32>
    %61 = math.erf %60 : vector<2x128xf32>
    %cst_29 = arith.constant 1.000000e+00 : f32
    %62 = vector.broadcast %cst_29 : f32 to vector<2x128xf32>
    %63 = arith.addf %62, %61 : vector<2x128xf32>
    %64 = arith.mulf %58, %63 : vector<2x128xf32>
    %c0_30 = arith.constant 0 : index
    %c0_31 = arith.constant 0 : index
    %65 = vector.load %arg10[%c0_30, %c0_31] : memref<128x256xf32, #tpu.memory_space<vmem>>, vector<128x256xf32>
    %cst_32 = arith.constant dense<0.000000e+00> : vector<2x256xf32>
    %66 = tpu.matmul %64, %65, %cst_32 {dimension_numbers = #tpu.dot_dimension_numbers<[1], [0], [0], [1], [0, 0, 1, 1], [], []>} : vector<2x128xf32>, vector<128x256xf32>, vector<2x256xf32> -> vector<2x256xf32>
    %c0_33 = arith.constant 0 : index
    %c0_34 = arith.constant 0 : index
    %67 = vector.load %arg11[%c0_33, %c0_34] : memref<1x256xf32, #tpu.memory_space<vmem>>, vector<1x256xf32>
    %68 = vector.broadcast %67 : vector<1x256xf32> to vector<2x256xf32>
    %69 = arith.addf %66, %68 : vector<2x256xf32>
    %70 = vector.extract_strided_slice %69 {offsets = [0, 0], sizes = [2, 128], strides = [1, 1]} : vector<2x256xf32> to vector<2x128xf32>
    %71 = vector.shape_cast %70 : vector<2x128xf32> to vector<2x1x128xf32>
    %72 = vector.extract_strided_slice %69 {offsets = [0, 128], sizes = [2, 128], strides = [1, 1]} : vector<2x256xf32> to vector<2x128xf32>
    %73 = vector.shape_cast %72 : vector<2x128xf32> to vector<2x1x128xf32>
    %74 = vector.broadcast %71 : vector<2x1x128xf32> to vector<2x8x128xf32>
    %75 = arith.mulf %35, %74 : vector<2x8x128xf32>
    %76 = vector.shape_cast %75 : vector<2x8x128xf32> to vector<16x128xf32>
    %77 = vector.broadcast %73 : vector<2x1x128xf32> to vector<2x8x128xf32>
    %78 = arith.subf %37, %77 : vector<2x8x128xf32>
    %79 = math.absf %78 : vector<2x8x128xf32>
    %80 = vector.shape_cast %79 : vector<2x8x128xf32> to vector<16x128xf32>
    %cst_35 = arith.constant dense<0.000000e+00> : vector<16x128xf32>
    %81 = tpu.matmul %76, %54, %cst_35 {dimension_numbers = #tpu.dot_dimension_numbers<[1], [0], [0], [1], [0, 0, 1, 1], [], []>} : vector<16x128xf32>, vector<128x128xf32>, vector<16x128xf32> -> vector<16x128xf32>
    %82 = vector.shape_cast %81 : vector<16x128xf32> to vector<2x8x128xf32>
    %cst_36 = arith.constant dense<0.000000e+00> : vector<16x128xf32>
    %83 = tpu.matmul %80, %54, %cst_36 {dimension_numbers = #tpu.dot_dimension_numbers<[1], [0], [0], [1], [0, 0, 1, 1], [], []>} : vector<16x128xf32>, vector<128x128xf32>, vector<16x128xf32> -> vector<16x128xf32>
    %84 = vector.shape_cast %83 : vector<16x128xf32> to vector<2x8x128xf32>
    %cst_37 = arith.constant 0.000000e+00 : f32
    %85 = vector.broadcast %cst_37 : f32 to vector<2x8x128xf32>
    %86 = arith.subf %85, %84 : vector<2x8x128xf32>
    %87 = math.tanh %82 : vector<2x8x128xf32>
    %88 = vector.broadcast %2 : vector<2x8x1xf32> to vector<2x8x128xf32>
    %89 = arith.mulf %86, %88 : vector<2x8x128xf32>
    %90 = vector.broadcast %8 : vector<2x8x1xf32> to vector<2x8x128xf32>
    %91 = arith.addf %89, %90 : vector<2x8x128xf32>
    %92 = arith.negf %91 : vector<2x8x128xf32>
    %93 = math.exp %92 : vector<2x8x128xf32>
    %cst_38 = arith.constant 1.000000e+00 : f32
    %94 = vector.broadcast %cst_38 : f32 to vector<2x8x128xf32>
    %95 = arith.addf %94, %93 : vector<2x8x128xf32>
    %96 = arith.divf %94, %95 : vector<2x8x128xf32>
    %97 = arith.mulf %87, %96 : vector<2x8x128xf32>
    %98 = arith.mulf %97, %33 : vector<2x8x128xf32>
    %cst_39 = arith.constant dense<0.000000e+00> : vector<2x128xf32>
    %99 = vector.multi_reduction <add>, %98, %cst_39 [1] : vector<2x8x128xf32> to vector<2x128xf32>
    %cst_40 = arith.constant 5.000000e-01 : f32
    %100 = vector.broadcast %cst_40 : f32 to vector<2x128xf32>
    %101 = arith.mulf %100, %99 : vector<2x128xf32>
    %cst_41 = arith.constant 0.707106769 : f32
    %102 = vector.broadcast %cst_41 : f32 to vector<2x128xf32>
    %103 = arith.mulf %99, %102 : vector<2x128xf32>
    %104 = math.erf %103 : vector<2x128xf32>
    %cst_42 = arith.constant 1.000000e+00 : f32
    %105 = vector.broadcast %cst_42 : f32 to vector<2x128xf32>
    %106 = arith.addf %105, %104 : vector<2x128xf32>
    %107 = arith.mulf %101, %106 : vector<2x128xf32>
    %c0_43 = arith.constant 0 : index
    %c0_44 = arith.constant 0 : index
    %108 = vector.load %arg8[%c0_43, %c0_44] : memref<128x128xf32, #tpu.memory_space<vmem>>, vector<128x128xf32>
    %cst_45 = arith.constant dense<0.000000e+00> : vector<2x128xf32>
    %109 = tpu.matmul %107, %108, %cst_45 {dimension_numbers = #tpu.dot_dimension_numbers<[1], [0], [0], [1], [0, 0, 1, 1], [], []>} : vector<2x128xf32>, vector<128x128xf32>, vector<2x128xf32> -> vector<2x128xf32>
    %c0_46 = arith.constant 0 : index
    %c0_47 = arith.constant 0 : index
    %110 = vector.load %arg9[%c0_46, %c0_47] : memref<1x128xf32, #tpu.memory_space<vmem>>, vector<1x128xf32>
    %111 = vector.broadcast %110 : vector<1x128xf32> to vector<2x128xf32>
    %112 = arith.addf %109, %111 : vector<2x128xf32>
    %113 = arith.negf %112 : vector<2x128xf32>
    %114 = math.exp %113 : vector<2x128xf32>
    %cst_48 = arith.constant 1.000000e+00 : f32
    %115 = vector.broadcast %cst_48 : f32 to vector<2x128xf32>
    %116 = arith.addf %115, %114 : vector<2x128xf32>
    %117 = arith.divf %115, %116 : vector<2x128xf32>
    %118 = arith.mulf %117, %107 : vector<2x128xf32>
    %cst_49 = arith.constant 1.000000e+00 : f32
    %119 = vector.broadcast %cst_49 : f32 to vector<2x128xf32>
    %120 = arith.subf %119, %117 : vector<2x128xf32>
    %121 = arith.mulf %120, %64 : vector<2x128xf32>
    %122 = arith.addf %118, %121 : vector<2x128xf32>
    %c0_50 = arith.constant 0 : index
    %c0_51 = arith.constant 0 : index
    %123 = vector.load %arg10[%c0_50, %c0_51] : memref<128x256xf32, #tpu.memory_space<vmem>>, vector<128x256xf32>
    %cst_52 = arith.constant dense<0.000000e+00> : vector<2x256xf32>
    %124 = tpu.matmul %122, %123, %cst_52 {dimension_numbers = #tpu.dot_dimension_numbers<[1], [0], [0], [1], [0, 0, 1, 1], [], []>} : vector<2x128xf32>, vector<128x256xf32>, vector<2x256xf32> -> vector<2x256xf32>
    %c0_53 = arith.constant 0 : index
    %c0_54 = arith.constant 0 : index
    %125 = vector.load %arg11[%c0_53, %c0_54] : memref<1x256xf32, #tpu.memory_space<vmem>>, vector<1x256xf32>
    %126 = vector.broadcast %125 : vector<1x256xf32> to vector<2x256xf32>
    %127 = arith.addf %124, %126 : vector<2x256xf32>
    %128 = vector.extract_strided_slice %127 {offsets = [0, 0], sizes = [2, 128], strides = [1, 1]} : vector<2x256xf32> to vector<2x128xf32>
    %129 = vector.shape_cast %128 : vector<2x128xf32> to vector<2x1x128xf32>
    %130 = vector.extract_strided_slice %127 {offsets = [0, 128], sizes = [2, 128], strides = [1, 1]} : vector<2x256xf32> to vector<2x128xf32>
    %131 = vector.shape_cast %130 : vector<2x128xf32> to vector<2x1x128xf32>
    %132 = vector.broadcast %129 : vector<2x1x128xf32> to vector<2x8x128xf32>
    %133 = arith.mulf %35, %132 : vector<2x8x128xf32>
    %134 = vector.shape_cast %133 : vector<2x8x128xf32> to vector<16x128xf32>
    %135 = vector.broadcast %131 : vector<2x1x128xf32> to vector<2x8x128xf32>
    %136 = arith.subf %37, %135 : vector<2x8x128xf32>
    %137 = math.absf %136 : vector<2x8x128xf32>
    %138 = vector.shape_cast %137 : vector<2x8x128xf32> to vector<16x128xf32>
    %cst_55 = arith.constant dense<0.000000e+00> : vector<16x128xf32>
    %139 = tpu.matmul %134, %54, %cst_55 {dimension_numbers = #tpu.dot_dimension_numbers<[1], [0], [0], [1], [0, 0, 1, 1], [], []>} : vector<16x128xf32>, vector<128x128xf32>, vector<16x128xf32> -> vector<16x128xf32>
    %140 = vector.shape_cast %139 : vector<16x128xf32> to vector<2x8x128xf32>
    %cst_56 = arith.constant dense<0.000000e+00> : vector<16x128xf32>
    %141 = tpu.matmul %138, %54, %cst_56 {dimension_numbers = #tpu.dot_dimension_numbers<[1], [0], [0], [1], [0, 0, 1, 1], [], []>} : vector<16x128xf32>, vector<128x128xf32>, vector<16x128xf32> -> vector<16x128xf32>
    %142 = vector.shape_cast %141 : vector<16x128xf32> to vector<2x8x128xf32>
    %cst_57 = arith.constant 0.000000e+00 : f32
    %143 = vector.broadcast %cst_57 : f32 to vector<2x8x128xf32>
    %144 = arith.subf %143, %142 : vector<2x8x128xf32>
    %145 = math.tanh %140 : vector<2x8x128xf32>
    %146 = vector.broadcast %2 : vector<2x8x1xf32> to vector<2x8x128xf32>
    %147 = arith.mulf %144, %146 : vector<2x8x128xf32>
    %148 = vector.broadcast %8 : vector<2x8x1xf32> to vector<2x8x128xf32>
    %149 = arith.addf %147, %148 : vector<2x8x128xf32>
    %150 = arith.negf %149 : vector<2x8x128xf32>
    %151 = math.exp %150 : vector<2x8x128xf32>
    %cst_58 = arith.constant 1.000000e+00 : f32
    %152 = vector.broadcast %cst_58 : f32 to vector<2x8x128xf32>
    %153 = arith.addf %152, %151 : vector<2x8x128xf32>
    %154 = arith.divf %152, %153 : vector<2x8x128xf32>
    %155 = arith.mulf %145, %154 : vector<2x8x128xf32>
    %156 = arith.mulf %155, %33 : vector<2x8x128xf32>
    %cst_59 = arith.constant dense<0.000000e+00> : vector<2x128xf32>
    %157 = vector.multi_reduction <add>, %156, %cst_59 [1] : vector<2x8x128xf32> to vector<2x128xf32>
    %cst_60 = arith.constant 5.000000e-01 : f32
    %158 = vector.broadcast %cst_60 : f32 to vector<2x128xf32>
    %159 = arith.mulf %158, %157 : vector<2x128xf32>
    %cst_61 = arith.constant 0.707106769 : f32
    %160 = vector.broadcast %cst_61 : f32 to vector<2x128xf32>
    %161 = arith.mulf %157, %160 : vector<2x128xf32>
    %162 = math.erf %161 : vector<2x128xf32>
    %cst_62 = arith.constant 1.000000e+00 : f32
    %163 = vector.broadcast %cst_62 : f32 to vector<2x128xf32>
    %164 = arith.addf %163, %162 : vector<2x128xf32>
    %165 = arith.mulf %159, %164 : vector<2x128xf32>
    %c0_63 = arith.constant 0 : index
    %c0_64 = arith.constant 0 : index
    %166 = vector.load %arg8[%c0_63, %c0_64] : memref<128x128xf32, #tpu.memory_space<vmem>>, vector<128x128xf32>
    %cst_65 = arith.constant dense<0.000000e+00> : vector<2x128xf32>
    %167 = tpu.matmul %165, %166, %cst_65 {dimension_numbers = #tpu.dot_dimension_numbers<[1], [0], [0], [1], [0, 0, 1, 1], [], []>} : vector<2x128xf32>, vector<128x128xf32>, vector<2x128xf32> -> vector<2x128xf32>
    %c0_66 = arith.constant 0 : index
    %c0_67 = arith.constant 0 : index
    %168 = vector.load %arg9[%c0_66, %c0_67] : memref<1x128xf32, #tpu.memory_space<vmem>>, vector<1x128xf32>
    %169 = vector.broadcast %168 : vector<1x128xf32> to vector<2x128xf32>
    %170 = arith.addf %167, %169 : vector<2x128xf32>
    %171 = arith.negf %170 : vector<2x128xf32>
    %172 = math.exp %171 : vector<2x128xf32>
    %cst_68 = arith.constant 1.000000e+00 : f32
    %173 = vector.broadcast %cst_68 : f32 to vector<2x128xf32>
    %174 = arith.addf %173, %172 : vector<2x128xf32>
    %175 = arith.divf %173, %174 : vector<2x128xf32>
    %176 = arith.mulf %175, %165 : vector<2x128xf32>
    %cst_69 = arith.constant 1.000000e+00 : f32
    %177 = vector.broadcast %cst_69 : f32 to vector<2x128xf32>
    %178 = arith.subf %177, %175 : vector<2x128xf32>
    %179 = arith.mulf %178, %122 : vector<2x128xf32>
    %180 = arith.addf %176, %179 : vector<2x128xf32>
    %c0_70 = arith.constant 0 : index
    %c0_71 = arith.constant 0 : index
    %181 = vector.load %arg13[%c0_70, %c0_71] : memref<2x128xf32, #tpu.memory_space<vmem>>, vector<2x128xf32>
    tpu.vector_store %arg13[%c0_70, %c0_71], %180 {strides = array<i32>} : memref<2x128xf32, #tpu.memory_space<vmem>>, vector<2x128xf32>,
    return
  }
  func.func @transform_0(%arg0: i32) -> (i32, i32, i32) {
    %c0_i32 = arith.constant 0 : i32
    %c0_i32_0 = arith.constant 0 : i32
    %c0_i32_1 = arith.constant 0 : i32
    return %arg0, %c0_i32, %c0_i32_0 : i32, i32, i32
  }
  func.func @transform_1(%arg0: i32) -> (i32, i32, i32) {
    %c0_i32 = arith.constant 0 : i32
    %c0_i32_0 = arith.constant 0 : i32
    %c0_i32_1 = arith.constant 0 : i32
    return %arg0, %c0_i32, %c0_i32_0 : i32, i32, i32
  }
  func.func @transform_2(%arg0: i32) -> (i32, i32) {
    %c0_i32 = arith.constant 0 : i32
    %c0_i32_0 = arith.constant 0 : i32
    %c0_i32_1 = arith.constant 0 : i32
    return %c0_i32, %c0_i32_0 : i32, i32
  }
  func.func @transform_3(%arg0: i32) -> (i32, i32) {
    %c0_i32 = arith.constant 0 : i32
    %c0_i32_0 = arith.constant 0 : i32
    %c0_i32_1 = arith.constant 0 : i32
    return %c0_i32, %c0_i32_0 : i32, i32
  }
  func.func @transform_4(%arg0: i32) -> (i32, i32) {
    %c0_i32 = arith.constant 0 : i32
    %c0_i32_0 = arith.constant 0 : i32
    %c0_i32_1 = arith.constant 0 : i32
    return %c0_i32, %c0_i32_0 : i32, i32
  }
  func.func @transform_5(%arg0: i32) -> (i32, i32) {
    %c0_i32 = arith.constant 0 : i32
    %c0_i32_0 = arith.constant 0 : i32
    %c0_i32_1 = arith.constant 0 : i32
    return %c0_i32, %c0_i32_0 : i32, i32
  }
  func.func @transform_6(%arg0: i32) -> (i32, i32) {
    %c0_i32 = arith.constant 0 : i32
    %c0_i32_0 = arith.constant 0 : i32
    %c0_i32_1 = arith.constant 0 : i32
    return %c0_i32, %c0_i32_0 : i32, i32
  }
  func.func @transform_7(%arg0: i32) -> (i32, i32) {
    %c0_i32 = arith.constant 0 : i32
    %c0_i32_0 = arith.constant 0 : i32
    %c0_i32_1 = arith.constant 0 : i32
    return %c0_i32, %c0_i32_0 : i32, i32
  }
  func.func @transform_8(%arg0: i32) -> (i32, i32) {
    %c0_i32 = arith.constant 0 : i32
    %c0_i32_0 = arith.constant 0 : i32
    %c0_i32_1 = arith.constant 0 : i32
    return %c0_i32, %c0_i32_0 : i32, i32
  }
  func.func @transform_9(%arg0: i32) -> (i32, i32) {
    %c0_i32 = arith.constant 0 : i32
    %c0_i32_0 = arith.constant 0 : i32
    %c0_i32_1 = arith.constant 0 : i32
    return %c0_i32, %c0_i32_0 : i32, i32
  }
  func.func @transform_10(%arg0: i32) -> (i32, i32) {
    %c0_i32 = arith.constant 0 : i32
    %c0_i32_0 = arith.constant 0 : i32
    %c0_i32_1 = arith.constant 0 : i32
    return %c0_i32, %c0_i32_0 : i32, i32
  }
  func.func @transform_11(%arg0: i32) -> (i32, i32) {
    %c0_i32 = arith.constant 0 : i32
    %c0_i32_0 = arith.constant 0 : i32
    %c0_i32_1 = arith.constant 0 : i32
    return %c0_i32, %c0_i32_0 : i32, i32
  }
  func.func @transform_12(%arg0: i32) -> (i32, i32) {
    %c0_i32 = arith.constant 0 : i32
    %c0_i32_0 = arith.constant 0 : i32
    return %arg0, %c0_i32 : i32, i32
  }
}

</mosaic_0001>

<llo_original>
// kernel: tpu_custom_call.1
$region0: #{tpu_custom_call.1}
  #allocation0 [shape = 'u32[]', space=smem, size = 0x4, offset = 0x4, fixed_abs, tag = 'smem constant byte address 0x4 - core index']
  #allocation1 [shape = 'u32[144,128]{1,0:T(1,128)}', space=vmem, size = 0x12000, scoped, tag = 'internal scratch']
  %s0 = inlined_call_operand.vmem [shape: f32[2,8,16], index: 0, kind: input, shape index: {}]
  %s1 = inlined_call_operand.vmem [shape: f32[2,8,1], index: 1, kind: input, shape index: {}]
  %s2 = inlined_call_operand.hbm [shape: f32[16,16], index: 2, kind: input, shape index: {}]
  %s3 = inlined_call_operand.vmem [shape: f32[1,16], index: 3, kind: input, shape index: {}]
  %s4 = inlined_call_operand.hbm [shape: f32[16,512], index: 4, kind: input, shape index: {}]
  %s5 = inlined_call_operand.vmem [shape: f32[1,512], index: 5, kind: input, shape index: {}]
  %s6 = inlined_call_operand.vmem [shape: f32[1,512], index: 6, kind: input, shape index: {}]
  %s7 = inlined_call_operand.hbm [shape: f32[128,128], index: 7, kind: input, shape index: {}]
  %s8 = inlined_call_operand.vmem [shape: f32[1,128], index: 8, kind: input, shape index: {}]
  %s9 = inlined_call_operand.hbm [shape: f32[128,256], index: 9, kind: input, shape index: {}]
  %s10 = inlined_call_operand.vmem [shape: f32[1,256], index: 10, kind: input, shape index: {}]
  %s11 = inlined_call_operand.hbm [shape: f32[128,128], index: 11, kind: input, shape index: {}]
  %s12 = inlined_call_operand.hbm [shape: f32[2,128], index: 12, kind: output, shape index: {}]
  %s13 = sld [smem:[#allocation0]]
  $region78: #{tpu_custom_call.1} parent=0
    _
  %s15 = ssub.s32 1, %s13
  %s16 = scalar_select 0, %s15, %s13
  $region1: #{tpu_custom_call.1} parent=0
    #allocation2 [shape = 'u8[8192]{0}', space=vmem, size = 0x2000, scoped, tag = 'input window, operand 2, single buffered']
    #allocation3 [shape = 's32[1]{0}', space=sflag, size = 0x4, scoped, tag = 'scoped memory for tpu_custom_call.1']
    #allocation4 [shape = 's32[1]{0}', space=sflag, size = 0x4, scoped, tag = 'scoped memory for tpu_custom_call.1']
    #allocation5 [shape = 'u8[32768]{0}', space=vmem, size = 0x8000, scoped, tag = 'input window, operand 4, single buffered']
    #allocation6 [shape = 's32[1]{0}', space=sflag, size = 0x4, scoped, tag = 'scoped memory for tpu_custom_call.1']
    #allocation7 [shape = 'u8[65536]{0}', space=vmem, size = 0x10000, scoped, tag = 'input window, operand 7, single buffered']
    #allocation8 [shape = 'u8[131072]{0}', space=vmem, size = 0x20000, scoped, tag = 'input window, operand 9, single buffered']
    #allocation9 [shape = 's32[1]{0}', space=sflag, size = 0x4, scoped, tag = 'scoped memory for tpu_custom_call.1']
    #allocation10 [shape = 'u8[65536]{0}', space=vmem, size = 0x10000, scoped, tag = 'input window, operand 11, single buffered']
    #allocation11 [shape = 'u8[1024]{0}', space=vmem, size = 0x400, scoped, tag = 'output window, operand 0, single buffered']
    %17 = vsyncpa [#allocation3], 0
    %18 = vsyncpa [#allocation6], 0
    %19 = vsyncpa [#allocation9], 0
    %20 = vsyncpa [#allocation4], 0
    // Predicated region
    $region2: #{tpu_custom_call.1} parent=1 // pred_check
      _
    $region3: #{tpu_custom_call.1} parent=1 // pred_check_branch
      %22 = sbr.rel (0) target = $region5
    $region4: #{tpu_custom_call.1} parent=1 // pred_region
      _
    $region5: #{tpu_custom_call.1} parent=1 // pred_fallthru
      _
    // Predicated region
    $region6: #{tpu_custom_call.1} parent=1 // pred_check
      _
    $region7: #{tpu_custom_call.1} parent=1 // pred_check_branch
      %24 = sbr.rel (0) target = $region9
    $region8: #{tpu_custom_call.1} parent=1 // pred_region
      _
    $region9: #{tpu_custom_call.1} parent=1 // pred_fallthru
      _
    // Predicated region
    $region10: #{tpu_custom_call.1} parent=1 // pred_check
      _
    $region11: #{tpu_custom_call.1} parent=1 // pred_check_branch
      %26 = sbr.rel (0) target = $region13
    $region12: #{tpu_custom_call.1} parent=1 // pred_region
      %s28 = ssub.s32 256, 256
      %29 = vsyncadd [#allocation3], %s28
      %s30 = sshll.u32 [#allocation2], 4
      %s31 = int_to_ptr.vmem [resolvable:$true] %s30
      %36 = dma.hbm_to_vmem [thread:$0]  %s2, 256, %s31, [#allocation3], 128, 128, 8
    $region13: #{tpu_custom_call.1} parent=1 // pred_fallthru
      _
    // Predicated region
    $region14: #{tpu_custom_call.1} parent=1 // pred_check
      _
    $region15: #{tpu_custom_call.1} parent=1 // pred_check_branch
      %38 = sbr.rel (0) target = $region17
    $region16: #{tpu_custom_call.1} parent=1 // pred_region
      _
    $region17: #{tpu_custom_call.1} parent=1 // pred_fallthru
      _
    // Predicated region
    $region18: #{tpu_custom_call.1} parent=1 // pred_check
      _
    $region19: #{tpu_custom_call.1} parent=1 // pred_check_branch
      %40 = sbr.rel (0) target = $region21
    $region20: #{tpu_custom_call.1} parent=1 // pred_region
      %s42 = ssub.s32 1024, 1024
      %43 = vsyncadd [#allocation6], %s42
      %s44 = sshll.u32 [#allocation5], 4
      %s45 = int_to_ptr.vmem [resolvable:$true] %s44
      %50 = dma.hbm_to_vmem [thread:$0]  %s4, 1024, %s45, [#allocation6], 512, 512, 32
    $region21: #{tpu_custom_call.1} parent=1 // pred_fallthru
      _
    // Predicated region
    $region22: #{tpu_custom_call.1} parent=1 // pred_check
      _
    $region23: #{tpu_custom_call.1} parent=1 // pred_check_branch
      %52 = sbr.rel (0) target = $region25
    $region24: #{tpu_custom_call.1} parent=1 // pred_region
      _
    $region25: #{tpu_custom_call.1} parent=1 // pred_fallthru
      _
    // Predicated region
    $region26: #{tpu_custom_call.1} parent=1 // pred_check
      _
    $region27: #{tpu_custom_call.1} parent=1 // pred_check_branch
      %54 = sbr.rel (0) target = $region29
    $region28: #{tpu_custom_call.1} parent=1 // pred_region
      _
    $region29: #{tpu_custom_call.1} parent=1 // pred_fallthru
      _
    // Predicated region
    $region30: #{tpu_custom_call.1} parent=1 // pred_check
      _
    $region31: #{tpu_custom_call.1} parent=1 // pred_check_branch
      %56 = sbr.rel (0) target = $region33
    $region32: #{tpu_custom_call.1} parent=1 // pred_region
      %s58 = ssub.s32 2048, 2048
      %59 = vsyncadd [#allocation6], %s58
      %s60 = sshll.u32 [#allocation7], 4
      %s61 = int_to_ptr.vmem [resolvable:$true] %s60
      %66 = dma.hbm_to_vmem [thread:$0]  %s7, 2048, %s61, [#allocation6], 128, 128, 8
    $region33: #{tpu_custom_call.1} parent=1 // pred_fallthru
      _
    // Predicated region
    $region34: #{tpu_custom_call.1} parent=1 // pred_check
      _
    $region35: #{tpu_custom_call.1} parent=1 // pred_check_branch
      %68 = sbr.rel (0) target = $region37
    $region36: #{tpu_custom_call.1} parent=1 // pred_region
      _
    $region37: #{tpu_custom_call.1} parent=1 // pred_fallthru
      _
    // Predicated region
    $region38: #{tpu_custom_call.1} parent=1 // pred_check
      _
    $region39: #{tpu_custom_call.1} parent=1 // pred_check_branch
      %70 = sbr.rel (0) target = $region41
    $region40: #{tpu_custom_call.1} parent=1 // pred_region
      %s72 = ssub.s32 4096, 4096
      %73 = vsyncadd [#allocation9], %s72
      %s74 = sshll.u32 [#allocation8], 4
      %s75 = int_to_ptr.vmem [resolvable:$true] %s74
      %80 = dma.hbm_to_vmem [thread:$0]  %s9, 4096, %s75, [#allocation9], 256, 256, 16
    $region41: #{tpu_custom_call.1} parent=1 // pred_fallthru
      _
    // Predicated region
    $region42: #{tpu_custom_call.1} parent=1 // pred_check
      _
    $region43: #{tpu_custom_call.1} parent=1 // pred_check_branch
      %82 = sbr.rel (0) target = $region45
    $region44: #{tpu_custom_call.1} parent=1 // pred_region
      _
    $region45: #{tpu_custom_call.1} parent=1 // pred_fallthru
      _
    // Predicated region
    $region46: #{tpu_custom_call.1} parent=1 // pred_check
      _
    $region47: #{tpu_custom_call.1} parent=1 // pred_check_branch
      %84 = sbr.rel (0) target = $region49
    $region48: #{tpu_custom_call.1} parent=1 // pred_region
      %s86 = ssub.s32 2048, 2048
      %87 = vsyncadd [#allocation9], %s86
      %s88 = sshll.u32 [#allocation10], 4
      %s89 = int_to_ptr.vmem [resolvable:$true] %s88
      %94 = dma.hbm_to_vmem [thread:$0]  %s11, 2048, %s89, [#allocation9], 128, 128, 8
    $region49: #{tpu_custom_call.1} parent=1 // pred_fallthru
      _
    // Predicated region
    $region50: #{tpu_custom_call.1} parent=1 // pred_check
      _
    $region51: #{tpu_custom_call.1} parent=1 // pred_check_branch
      %96 = sbr.rel (0) target = $region53
    $region52: #{tpu_custom_call.1} parent=1 // pred_region
      %97 = dma.done [#allocation3], 256
    $region53: #{tpu_custom_call.1} parent=1 // pred_fallthru
      _
    // Predicated region
    $region54: #{tpu_custom_call.1} parent=1 // pred_check
      _
    $region55: #{tpu_custom_call.1} parent=1 // pred_check_branch
      %99 = sbr.rel (0) target = $region57
    $region56: #{tpu_custom_call.1} parent=1 // pred_region
      %100 = dma.done [#allocation6], 1024
    $region57: #{tpu_custom_call.1} parent=1 // pred_fallthru
      _
    // Predicated region
    $region58: #{tpu_custom_call.1} parent=1 // pred_check
      _
    $region59: #{tpu_custom_call.1} parent=1 // pred_check_branch
      %102 = sbr.rel (0) target = $region61
    $region60: #{tpu_custom_call.1} parent=1 // pred_region
      %103 = dma.done [#allocation6], 2048
    $region61: #{tpu_custom_call.1} parent=1 // pred_fallthru
      _
    // Predicated region
    $region62: #{tpu_custom_call.1} parent=1 // pred_check
      _
    $region63: #{tpu_custom_call.1} parent=1 // pred_check_branch
      %105 = sbr.rel (0) target = $region65
    $region64: #{tpu_custom_call.1} parent=1 // pred_region
      %106 = dma.done [#allocation9], 4096
    $region65: #{tpu_custom_call.1} parent=1 // pred_fallthru
      _
    // Predicated region
    $region66: #{tpu_custom_call.1} parent=1 // pred_check
      _
    $region67: #{tpu_custom_call.1} parent=1 // pred_check_branch
      %108 = sbr.rel (0) target = $region69
    $region68: #{tpu_custom_call.1} parent=1 // pred_region
      %109 = dma.done [#allocation9], 2048
    $region69: #{tpu_custom_call.1} parent=1 // pred_fallthru
      _
    %v110 = vld [vmem:[%s0] sm:$0xff]
    %v111 = vld [vmem:[%s0 + $0x8] sm:$0xff]
    %v112 = vld [vmem:[%s1] sm:$0xff]
    %v113 = vld [vmem:[%s1 + $0x8] sm:$0xff]
    %vm114 = vcmp.eq.f32.partialorder %v112, 0.0
    %vm115 = vcmp.eq.f32.partialorder %v113, 0.0
    %v116 = vsel %vm114, -inf, 0.0
    %v117 = vsel %vm115, -inf, 0.0
    %v118 = vld [vmem:[#allocation2] sm:$0xff]
    %v119 = vld [vmem:[#allocation2 + $0x8] sm:$0xff]
    %v120 = vld [vmem:[%s3] sm:$0x1]
    %v122 = vlaneseq
    %v123 = vshrl.u32 %v122, 7
    %v124 = vsub.s32 0, %v123
    %v125 = vrot.slane %v120, %v124
    %vm127 = vcmask 130048
    %v129 = vsel %vm127, %v110, 0
    %v132 = vsel %vm127, %v111, 0
    %134 = vmatprep.subr.mxu0 0.0
    %135 = vmatpush1.msra.mxu0 0.0
    %136 = vmatprep.subr.mxu0 0.0
    %137 = vmatpush1.msra.mxu0 0.0
    %138 = vmatprep.subr.mxu0 0.0
    %139 = vmatpush1.msra.mxu0 0.0
    %140 = vmatprep.subr.mxu0 0.0
    %141 = vmatpush1.msra.mxu0 0.0
    %142 = vmatprep.subr.mxu0 0.0
    %143 = vmatpush1.msra.mxu0 0.0
    %144 = vmatprep.subr.mxu0 0.0
    %145 = vmatpush1.msra.mxu0 0.0
    %146 = vmatprep.subr.mxu0 0.0
    %147 = vmatpush1.msra.mxu0 0.0
    %148 = vmatprep.subr.mxu0 0.0
    %149 = vmatpush1.msra.mxu0 0.0
    %150 = vmatprep.subr.mxu0 0.0
    %151 = vmatpush1.msra.mxu0 0.0
    %152 = vmatprep.subr.mxu0 0.0
    %153 = vmatpush1.msra.mxu0 0.0
    %154 = vmatprep.subr.mxu0 0.0
    %155 = vmatpush1.msra.mxu0 0.0
    %156 = vmatprep.subr.mxu0 0.0
    %157 = vmatpush1.msra.mxu0 0.0
    %158 = vmatprep.subr.mxu0 0.0
    %159 = vmatpush1.msra.mxu0 0.0
    %160 = vmatprep.subr.mxu0 0.0
    %161 = vmatpush1.msra.mxu0 0.0
    %162 = vmatprep.subr.mxu0 0.0
    %163 = vmatpush1.msra.mxu0 %v119
    %164 = vmatprep.subr.mxu0 0.0
    %165 = vmatpush1.msra.mxu0 %v118
    %166 = vmatprep.subr.mxu0 0.0
    %167 = vmatpush2.msra.mxu0 0.0
    %168 = vmatprep.subr.mxu0 0.0
    %169 = vmatpush2.msra.mxu0 0.0
    %170 = vmatprep.subr.mxu0 0.0
    %171 = vmatpush2.msra.mxu0 0.0
    %172 = vmatprep.subr.mxu0 0.0
    %173 = vmatpush2.msra.mxu0 0.0
    %174 = vmatprep.subr.mxu0 0.0
    %175 = vmatpush2.msra.mxu0 0.0
    %176 = vmatprep.subr.mxu0 0.0
    %177 = vmatpush2.msra.mxu0 0.0
    %178 = vmatprep.subr.mxu0 0.0
    %179 = vmatpush2.msra.mxu0 0.0
    %180 = vmatprep.subr.mxu0 0.0
    %181 = vmatpush2.msra.mxu0 0.0
    %182 = vmatprep.subr.mxu0 0.0
    %183 = vmatpush2.msra.mxu0 0.0
    %184 = vmatprep.subr.mxu0 0.0
    %185 = vmatpush2.msra.mxu0 0.0
    %186 = vmatprep.subr.mxu0 0.0
    %187 = vmatpush2.msra.mxu0 0.0
    %188 = vmatprep.subr.mxu0 0.0
    %189 = vmatpush2.msra.mxu0 0.0
    %190 = vmatprep.subr.mxu0 0.0
    %191 = vmatpush2.msra.mxu0 0.0
    %192 = vmatprep.subr.mxu0 0.0
    %193 = vmatpush2.msra.mxu0 0.0
    %194 = vmatprep.subr.mxu0 0.0
    %195 = vmatpush2.msra.mxu0 0.0
    %196 = vmatprep.subr.mxu0 0.0
    %197 = vmatpush2.msra.mxu0 0.0
    %198 = vmatprep.mubr.f32.mxu0 0.0
    %199 = vmatmul.mubr.f32.gmra.mxu0 %v129
    %v200 = vpop.f32.mrf.mxu0
    %v201 = vadd.f32 %v125, %v200
    %v202 = vpop.f32.mrf.mxu0
    %203 = vmatprep.mubr.f32.mxu0 0.0
    %204 = vmatmul.mubr.f32.gmra.mxu0 %v132
    %v205 = vpop.f32.mrf.mxu0
    %v206 = vadd.f32 %v125, %v205
    %v207 = vpop.f32.mrf.mxu0
    %208 = vdwg.mxu0
    %v209 = vmul.f32 %v201, 0.5
    %v210 = vmul.f32 %v206, 0.5
    %v211 = vmul.f32 %v201, 0.70710677
    %v212 = vmul.f32 %v206, 0.70710677
    %v213 = verf.f32.pop %v211
    %v214 = verf.f32.pop %v212
    %v215 = vadd.f32 %v213, 1.0
    %v216 = vadd.f32 %v214, 1.0
    %v217 = vmul.f32 %v209, %v215
    %v218 = vmul.f32 %v210, %v216
    %v219 = vld [vmem:[#allocation5] sm:$0xff]
    %v220 = vld [vmem:[#allocation5 + $0x8] sm:$0xff]
    %v221 = vld [vmem:[#allocation5 + $0x10] sm:$0xff]
    %v222 = vld [vmem:[#allocation5 + $0x18] sm:$0xff]
    %v223 = vld [vmem:[#allocation5 + $0x20] sm:$0xff]
    %v224 = vld [vmem:[#allocation5 + $0x28] sm:$0xff]
    %v225 = vld [vmem:[#allocation5 + $0x30] sm:$0xff]
    %v226 = vld [vmem:[#allocation5 + $0x38] sm:$0xff]
    %v227 = vld [vmem:[%s5] sm:$0xf]
    %v229 = vlaneseq
    %v230 = vshrl.u32 %v229, 7
    %v231 = vsub.s32 0, %v230
    %v232 = vrot.slane %v227, %v231
    %v233 = vlaneseq
    %v234 = vshrl.u32 %v233, 7
    %v235 = vsub.s32 1, %v234
    %v236 = vrot.slane %v227, %v235
    %v237 = vlaneseq
    %v238 = vshrl.u32 %v237, 7
    %v239 = vsub.s32 2, %v238
    %v240 = vrot.slane %v227, %v239
    %v241 = vlaneseq
    %v242 = vshrl.u32 %v241, 7
    %v243 = vsub.s32 3, %v242
    %v244 = vrot.slane %v227, %v243
    %v250 = vsel %vm127, %v217, 0
    %v253 = vsel %vm127, %v218, 0
    %255 = vmatprep.subr.mxu0 0.0
    %256 = vmatpush1.msra.mxu0 0.0
    %257 = vmatprep.subr.mxu0 0.0
    %258 = vmatpush1.msra.mxu0 0.0
    %259 = vmatprep.subr.mxu0 0.0
    %260 = vmatpush1.msra.mxu0 0.0
    %261 = vmatprep.subr.mxu0 0.0
    %262 = vmatpush1.msra.mxu0 0.0
    %263 = vmatprep.subr.mxu0 0.0
    %264 = vmatpush1.msra.mxu0 0.0
    %265 = vmatprep.subr.mxu0 0.0
    %266 = vmatpush1.msra.mxu0 0.0
    %267 = vmatprep.subr.mxu0 0.0
    %268 = vmatpush1.msra.mxu0 0.0
    %269 = vmatprep.subr.mxu0 0.0
    %270 = vmatpush1.msra.mxu0 0.0
    %271 = vmatprep.subr.mxu0 0.0
    %272 = vmatpush1.msra.mxu0 0.0
    %273 = vmatprep.subr.mxu0 0.0
    %274 = vmatpush1.msra.mxu0 0.0
    %275 = vmatprep.subr.mxu0 0.0
    %276 = vmatpush1.msra.mxu0 0.0
    %277 = vmatprep.subr.mxu0 0.0
    %278 = vmatpush1.msra.mxu0 0.0
    %279 = vmatprep.subr.mxu0 0.0
    %280 = vmatpush1.msra.mxu0 0.0
    %281 = vmatprep.subr.mxu0 0.0
    %282 = vmatpush1.msra.mxu0 0.0
    %283 = vmatprep.subr.mxu0 %v224
    %284 = vmatpush1.msra.mxu0 %v223
    %285 = vmatprep.subr.mxu0 %v220
    %286 = vmatpush1.msra.mxu0 %v219
    %287 = vmatprep.subr.mxu0 0.0
    %288 = vmatpush2.msra.mxu0 0.0
    %289 = vmatprep.subr.mxu0 0.0
    %290 = vmatpush2.msra.mxu0 0.0
    %291 = vmatprep.subr.mxu0 0.0
    %292 = vmatpush2.msra.mxu0 0.0
    %293 = vmatprep.subr.mxu0 0.0
    %294 = vmatpush2.msra.mxu0 0.0
    %295 = vmatprep.subr.mxu0 0.0
    %296 = vmatpush2.msra.mxu0 0.0
    %297 = vmatprep.subr.mxu0 0.0
    %298 = vmatpush2.msra.mxu0 0.0
    %299 = vmatprep.subr.mxu0 0.0
    %300 = vmatpush2.msra.mxu0 0.0
    %301 = vmatprep.subr.mxu0 0.0
    %302 = vmatpush2.msra.mxu0 0.0
    %303 = vmatprep.subr.mxu0 0.0
    %304 = vmatpush2.msra.mxu0 0.0
    %305 = vmatprep.subr.mxu0 0.0
    %306 = vmatpush2.msra.mxu0 0.0
    %307 = vmatprep.subr.mxu0 0.0
    %308 = vmatpush2.msra.mxu0 0.0
    %309 = vmatprep.subr.mxu0 0.0
    %310 = vmatpush2.msra.mxu0 0.0
    %311 = vmatprep.subr.mxu0 0.0
    %312 = vmatpush2.msra.mxu0 0.0
    %313 = vmatprep.subr.mxu0 0.0
    %314 = vmatpush2.msra.mxu0 0.0
    %315 = vmatprep.subr.mxu0 0.0
    %316 = vmatpush2.msra.mxu0 0.0
    %317 = vmatprep.subr.mxu0 0.0
    %318 = vmatpush2.msra.mxu0 0.0
    %319 = vmatprep.mubr.f32.mxu0 0.0
    %320 = vmatmul.mubr.f32.gmra.mxu0 %v250
    %v321 = vpop.f32.mrf.mxu0
    %v322 = vadd.f32 %v232, %v321
    %v323 = vpop.f32.mrf.mxu0
    %v324 = vadd.f32 %v236, %v323
    %325 = vmatprep.mubr.f32.mxu0 0.0
    %326 = vmatmul.mubr.f32.gmra.mxu0 %v253
    %v327 = vpop.f32.mrf.mxu0
    %v328 = vadd.f32 %v232, %v327
    %v329 = vpop.f32.mrf.mxu0
    %v330 = vadd.f32 %v236, %v329
    %331 = vdwg.mxu0
    %332 = vmatprep.subr.mxu0 0.0
    %333 = vmatpush1.msra.mxu0 0.0
    %334 = vmatprep.subr.mxu0 0.0
    %335 = vmatpush1.msra.mxu0 0.0
    %336 = vmatprep.subr.mxu0 0.0
    %337 = vmatpush1.msra.mxu0 0.0
    %338 = vmatprep.subr.mxu0 0.0
    %339 = vmatpush1.msra.mxu0 0.0
    %340 = vmatprep.subr.mxu0 0.0
    %341 = vmatpush1.msra.mxu0 0.0
    %342 = vmatprep.subr.mxu0 0.0
    %343 = vmatpush1.msra.mxu0 0.0
    %344 = vmatprep.subr.mxu0 0.0
    %345 = vmatpush1.msra.mxu0 0.0
    %346 = vmatprep.subr.mxu0 0.0
    %347 = vmatpush1.msra.mxu0 0.0
    %348 = vmatprep.subr.mxu0 0.0
    %349 = vmatpush1.msra.mxu0 0.0
    %350 = vmatprep.subr.mxu0 0.0
    %351 = vmatpush1.msra.mxu0 0.0
    %352 = vmatprep.subr.mxu0 0.0
    %353 = vmatpush1.msra.mxu0 0.0
    %354 = vmatprep.subr.mxu0 0.0
    %355 = vmatpush1.msra.mxu0 0.0
    %356 = vmatprep.subr.mxu0 0.0
    %357 = vmatpush1.msra.mxu0 0.0
    %358 = vmatprep.subr.mxu0 0.0
    %359 = vmatpush1.msra.mxu0 0.0
    %360 = vmatprep.subr.mxu0 %v226
    %361 = vmatpush1.msra.mxu0 %v225
    %362 = vmatprep.subr.mxu0 %v222
    %363 = vmatpush1.msra.mxu0 %v221
    %364 = vmatprep.subr.mxu0 0.0
    %365 = vmatpush2.msra.mxu0 0.0
    %366 = vmatprep.subr.mxu0 0.0
    %367 = vmatpush2.msra.mxu0 0.0
    %368 = vmatprep.subr.mxu0 0.0
    %369 = vmatpush2.msra.mxu0 0.0
    %370 = vmatprep.subr.mxu0 0.0
    %371 = vmatpush2.msra.mxu0 0.0
    %372 = vmatprep.subr.mxu0 0.0
    %373 = vmatpush2.msra.mxu0 0.0
    %374 = vmatprep.subr.mxu0 0.0
    %375 = vmatpush2.msra.mxu0 0.0
    %376 = vmatprep.subr.mxu0 0.0
    %377 = vmatpush2.msra.mxu0 0.0
    %378 = vmatprep.subr.mxu0 0.0
    %379 = vmatpush2.msra.mxu0 0.0
    %380 = vmatprep.subr.mxu0 0.0
    %381 = vmatpush2.msra.mxu0 0.0
    %382 = vmatprep.subr.mxu0 0.0
    %383 = vmatpush2.msra.mxu0 0.0
    %384 = vmatprep.subr.mxu0 0.0
    %385 = vmatpush2.msra.mxu0 0.0
    %386 = vmatprep.subr.mxu0 0.0
    %387 = vmatpush2.msra.mxu0 0.0
    %388 = vmatprep.subr.mxu0 0.0
    %389 = vmatpush2.msra.mxu0 0.0
    %390 = vmatprep.subr.mxu0 0.0
    %391 = vmatpush2.msra.mxu0 0.0
    %392 = vmatprep.subr.mxu0 0.0
    %393 = vmatpush2.msra.mxu0 0.0
    %394 = vmatprep.subr.mxu0 0.0
    %395 = vmatpush2.msra.mxu0 0.0
    %396 = vmatprep.mubr.f32.mxu0 0.0
    %397 = vmatmul.mubr.f32.gmra.mxu0 %v250
    %v398 = vpop.f32.mrf.mxu0
    %v399 = vadd.f32 %v240, %v398
    %v400 = vpop.f32.mrf.mxu0
    %v401 = vadd.f32 %v244, %v400
    %402 = vmatprep.mubr.f32.mxu0 0.0
    %403 = vmatmul.mubr.f32.gmra.mxu0 %v253
    %v404 = vpop.f32.mrf.mxu0
    %v405 = vadd.f32 %v240, %v404
    %v406 = vpop.f32.mrf.mxu0
    %v407 = vadd.f32 %v244, %v406
    %408 = vdwg.mxu0
    %410 = vset.pattern.permute.xlu0 0
    %411 = vperm.xlu0 %410, %v112
    %v412 = vpop.permute.xlu0 %411
    %415 = vset.pattern.permute.xlu0 0
    %416 = vperm.xlu0 %415, %v113
    %v417 = vpop.permute.xlu0 %416
    %v419 = vmul.f32 %v322, %v412
    %v420 = vmul.f32 %v324, %v412
    %v421 = vmul.f32 %v399, %v412
    %v422 = vmul.f32 %v401, %v412
    %v423 = vmul.f32 %v328, %v417
    %v424 = vmul.f32 %v330, %v417
    %v425 = vmul.f32 %v405, %v417
    %v426 = vmul.f32 %v407, %v417
    %v427 = vld [vmem:[%s6] sm:$0xf]
    %v429 = vlaneseq
    %v430 = vshrl.u32 %v429, 7
    %v431 = vsub.s32 0, %v430
    %v432 = vrot.slane %v427, %v431
    %v433 = vlaneseq
    %v434 = vshrl.u32 %v433, 7
    %v435 = vsub.s32 1, %v434
    %v436 = vrot.slane %v427, %v435
    %v437 = vlaneseq
    %v438 = vshrl.u32 %v437, 7
    %v439 = vsub.s32 2, %v438
    %v440 = vrot.slane %v427, %v439
    %v441 = vlaneseq
    %v442 = vshrl.u32 %v441, 7
    %v443 = vsub.s32 3, %v442
    %v444 = vrot.slane %v427, %v443
    %v449 = vadd.f32 %v419, %v432
    %v450 = vadd.f32 %v420, %v436
    %v451 = vadd.f32 %v421, %v440
    %v452 = vadd.f32 %v422, %v444
    %v453 = vadd.f32 %v423, %v432
    %v454 = vadd.f32 %v424, %v436
    %v455 = vadd.f32 %v425, %v440
    %v456 = vadd.f32 %v426, %v444
    %v457 = vmul.f32 %v452, %v412
    %v458 = vmul.f32 %v456, %v417
    %460 = vset.pattern.permute.xlu0 0
    %461 = vperm.xlu0 %460, %v116
    %v462 = vpop.permute.xlu0 %461
    %465 = vset.pattern.permute.xlu0 0
    %466 = vperm.xlu0 %465, %v117
    %v467 = vpop.permute.xlu0 %466
    %v469 = vadd.f32 %v457, %v462
    %v470 = vadd.f32 %v458, %v467
    %v471 = vrot.slane %v469, 4
    %v472 = vmax.f32 %v469, %v471
    %v473 = vrot.slane %v472, 2
    %v474 = vmax.f32 %v472, %v473
    %v475 = vrot.slane %v474, 1
    %v476 = vmax.f32 %v474, %v475
    %v477 = vrot.slane %v470, 4
    %v478 = vmax.f32 %v470, %v477
    %v479 = vrot.slane %v478, 2
    %v480 = vmax.f32 %v478, %v479
    %v481 = vrot.slane %v480, 1
    %v482 = vmax.f32 %v480, %v481
    %v483 = vsub.f32 %v469, %v476
    %v484 = vsub.f32 %v470, %v482
    %v485 = vmul.f32 %v483, 1.442695
    %v486 = vpow.pop %v485
    %v487 = vmul.f32 %v484, 1.442695
    %v488 = vpow.pop %v487
    %v489 = vrot.slane %v486, 4
    %v490 = vadd.f32 %v486, %v489
    %v491 = vrot.slane %v490, 2
    %v492 = vadd.f32 %v490, %v491
    %v493 = vrot.slane %v492, 1
    %v494 = vadd.f32 %v492, %v493
    %v495 = vrot.slane %v488, 4
    %v496 = vadd.f32 %v488, %v495
    %v497 = vrot.slane %v496, 2
    %v498 = vadd.f32 %v496, %v497
    %v499 = vrot.slane %v498, 1
    %v500 = vadd.f32 %v498, %v499
    %v501 = vrcp.pop %v494
    %v502 = vrcp.pop %v500
    %v503 = vmul.f32 %v486, %v501
    %v504 = vmul.f32 %v488, %v502
    %v505 = vld [vmem:[#allocation10] sm:$0xff]
    %v506 = vld [vmem:[#allocation10 + $0x8] sm:$0xff]
    %v507 = vld [vmem:[#allocation10 + $0x10] sm:$0xff]
    %v508 = vld [vmem:[#allocation10 + $0x18] sm:$0xff]
    %v509 = vld [vmem:[#allocation10 + $0x20] sm:$0xff]
    %v510 = vld [vmem:[#allocation10 + $0x28] sm:$0xff]
    %v511 = vld [vmem:[#allocation10 + $0x30] sm:$0xff]
    %v512 = vld [vmem:[#allocation10 + $0x38] sm:$0xff]
    %v513 = vld [vmem:[#allocation10 + $0x40] sm:$0xff]
    %v514 = vld [vmem:[#allocation10 + $0x48] sm:$0xff]
    %v515 = vld [vmem:[#allocation10 + $0x50] sm:$0xff]
    %v516 = vld [vmem:[#allocation10 + $0x58] sm:$0xff]
    %v517 = vld [vmem:[#allocation10 + $0x60] sm:$0xff]
    %v518 = vld [vmem:[#allocation10 + $0x68] sm:$0xff]
    %v519 = vld [vmem:[#allocation10 + $0x70] sm:$0xff]
    %v520 = vld [vmem:[#allocation10 + $0x78] sm:$0xff]
    %v521 = vmul.f32 %v503, %v449
    %v522 = vmul.f32 %v504, %v453
    %v523 = vrot.slane %v521, 4
    %v524 = vadd.f32 %v521, %v523
    %v525 = vrot.slane %v524, 2
    %v526 = vadd.f32 %v524, %v525
    %v527 = vrot.slane %v526, 1
    %v528 = vadd.f32 %v526, %v527
    %v529 = vrot.slane %v522, 4
    %v530 = vadd.f32 %v522, %v529
    %v531 = vrot.slane %v530, 2
    %v532 = vadd.f32 %v530, %v531
    %v533 = vrot.slane %v532, 1
    %v534 = vadd.f32 %v532, %v533
    %v535 = vmul.f32 %v528, 0.5
    %v536 = vmul.f32 %v534, 0.5
    %v537 = vmul.f32 %v528, 0.70710677
    %v538 = vmul.f32 %v534, 0.70710677
    %v539 = verf.f32.pop %v537
    %v540 = verf.f32.pop %v538
    %v541 = vadd.f32 %v539, 1.0
    %v542 = vadd.f32 %v540, 1.0
    %v543 = vmul.f32 %v535, %v541
    %v544 = vmul.f32 %v536, %v542
    %v545 = vld [vmem:[#allocation8] sm:$0xff]
    %v546 = vld [vmem:[#allocation8 + $0x8] sm:$0xff]
    %v547 = vld [vmem:[#allocation8 + $0x10] sm:$0xff]
    %v548 = vld [vmem:[#allocation8 + $0x18] sm:$0xff]
    %v549 = vld [vmem:[#allocation8 + $0x20] sm:$0xff]
    %v550 = vld [vmem:[#allocation8 + $0x28] sm:$0xff]
    %v551 = vld [vmem:[#allocation8 + $0x30] sm:$0xff]
    %v552 = vld [vmem:[#allocation8 + $0x38] sm:$0xff]
    %v553 = vld [vmem:[#allocation8 + $0x40] sm:$0xff]
    %v554 = vld [vmem:[#allocation8 + $0x48] sm:$0xff]
    %v555 = vld [vmem:[#allocation8 + $0x50] sm:$0xff]
    %v556 = vld [vmem:[#allocation8 + $0x58] sm:$0xff]
    %v557 = vld [vmem:[#allocation8 + $0x60] sm:$0xff]
    %v558 = vld [vmem:[#allocation8 + $0x68] sm:$0xff]
    %v559 = vld [vmem:[#allocation8 + $0x70] sm:$0xff]
    %v560 = vld [vmem:[#allocation8 + $0x78] sm:$0xff]
    %v561 = vld [vmem:[#allocation8 + $0x80] sm:$0xff]
    %v562 = vld [vmem:[#allocation8 + $0x88] sm:$0xff]
    %v563 = vld [vmem:[#allocation8 + $0x90] sm:$0xff]
    %v564 = vld [vmem:[#allocation8 + $0x98] sm:$0xff]
    %v565 = vld [vmem:[#allocation8 + $0xa0] sm:$0xff]
    %v566 = vld [vmem:[#allocation8 + $0xa8] sm:$0xff]
    %v567 = vld [vmem:[#allocation8 + $0xb0] sm:$0xff]
    %v568 = vld [vmem:[#allocation8 + $0xb8] sm:$0xff]
    %v569 = vld [vmem:[#allocation8 + $0xc0] sm:$0xff]
    %v570 = vld [vmem:[#allocation8 + $0xc8] sm:$0xff]
    %v571 = vld [vmem:[#allocation8 + $0xd0] sm:$0xff]
    %v572 = vld [vmem:[#allocation8 + $0xd8] sm:$0xff]
    %v573 = vld [vmem:[#allocation8 + $0xe0] sm:$0xff]
    %v574 = vld [vmem:[#allocation8 + $0xe8] sm:$0xff]
    %v575 = vld [vmem:[#allocation8 + $0xf0] sm:$0xff]
    %v576 = vld [vmem:[#allocation8 + $0xf8] sm:$0xff]
    %v577 = vld [vmem:[%s10] sm:$0x3]
    %v579 = vlaneseq
    %v580 = vshrl.u32 %v579, 7
    %v581 = vsub.s32 0, %v580
    %v582 = vrot.slane %v577, %v581
    %v583 = vlaneseq
    %v584 = vshrl.u32 %v583, 7
    %v585 = vsub.s32 1, %v584
    %v586 = vrot.slane %v577, %v585
    %vm591 = vcmask 1041409
    %v592 = vsel %vm591, %v544, %v543
    %594 = vmatprep.subr.mxu0 %v576
    %595 = vmatpush1.msra.mxu0 %v575
    %596 = vmatprep.subr.mxu0 %v574
    %597 = vmatpush1.msra.mxu0 %v573
    %598 = vmatprep.subr.mxu0 %v572
    %599 = vmatpush1.msra.mxu0 %v571
    %600 = vmatprep.subr.mxu0 %v570
    %601 = vmatpush1.msra.mxu0 %v569
    %602 = vmatprep.subr.mxu0 %v568
    %603 = vmatpush1.msra.mxu0 %v567
    %604 = vmatprep.subr.mxu0 %v566
    %605 = vmatpush1.msra.mxu0 %v565
    %606 = vmatprep.subr.mxu0 %v564
    %607 = vmatpush1.msra.mxu0 %v563
    %608 = vmatprep.subr.mxu0 %v562
    %609 = vmatpush1.msra.mxu0 %v561
    %610 = vmatprep.subr.mxu0 %v560
    %611 = vmatpush1.msra.mxu0 %v559
    %612 = vmatprep.subr.mxu0 %v558
    %613 = vmatpush1.msra.mxu0 %v557
    %614 = vmatprep.subr.mxu0 %v556
    %615 = vmatpush1.msra.mxu0 %v555
    %616 = vmatprep.subr.mxu0 %v554
    %617 = vmatpush1.msra.mxu0 %v553
    %618 = vmatprep.subr.mxu0 %v552
    %619 = vmatpush1.msra.mxu0 %v551
    %620 = vmatprep.subr.mxu0 %v550
    %621 = vmatpush1.msra.mxu0 %v549
    %622 = vmatprep.subr.mxu0 %v548
    %623 = vmatpush1.msra.mxu0 %v547
    %624 = vmatprep.subr.mxu0 %v546
    %625 = vmatpush1.msra.mxu0 %v545
    %626 = vmatprep.subr.mxu0 0.0
    %627 = vmatpush2.msra.mxu0 0.0
    %628 = vmatprep.subr.mxu0 0.0
    %629 = vmatpush2.msra.mxu0 0.0
    %630 = vmatprep.subr.mxu0 0.0
    %631 = vmatpush2.msra.mxu0 0.0
    %632 = vmatprep.subr.mxu0 0.0
    %633 = vmatpush2.msra.mxu0 0.0
    %634 = vmatprep.subr.mxu0 0.0
    %635 = vmatpush2.msra.mxu0 0.0
    %636 = vmatprep.subr.mxu0 0.0
    %637 = vmatpush2.msra.mxu0 0.0
    %638 = vmatprep.subr.mxu0 0.0
    %639 = vmatpush2.msra.mxu0 0.0
    %640 = vmatprep.subr.mxu0 0.0
    %641 = vmatpush2.msra.mxu0 0.0
    %642 = vmatprep.subr.mxu0 0.0
    %643 = vmatpush2.msra.mxu0 0.0
    %644 = vmatprep.subr.mxu0 0.0
    %645 = vmatpush2.msra.mxu0 0.0
    %646 = vmatprep.subr.mxu0 0.0
    %647 = vmatpush2.msra.mxu0 0.0
    %648 = vmatprep.subr.mxu0 0.0
    %649 = vmatpush2.msra.mxu0 0.0
    %650 = vmatprep.subr.mxu0 0.0
    %651 = vmatpush2.msra.mxu0 0.0
    %652 = vmatprep.subr.mxu0 0.0
    %653 = vmatpush2.msra.mxu0 0.0
    %654 = vmatprep.subr.mxu0 0.0
    %655 = vmatpush2.msra.mxu0 0.0
    %656 = vmatprep.subr.mxu0 0.0
    %657 = vmatpush2.msra.mxu0 0.0
    %658 = vmatprep.mubr.f32.mxu0 0.0
    %659 = vmatmul.mubr.f32.gmra.mxu0 %v592
    %v660 = vpop.f32.mrf.mxu0
    %v661 = vadd.f32 %v582, %v660
    %v662 = vpop.f32.mrf.mxu0
    %v663 = vadd.f32 %v586, %v662
    %664 = vdwg.mxu0
    %v667 = vunpack.c.l.s4 1966171168
    %v668 = vunpack.c.0.s8 %v667
    %v669 = vlaneseq
    %v670 = vshrl.u32 %v669, 7
    %v671 = vsub.s32 %v668, %v670
    %v672 = vrot.slane %v661, %v671
    %v673 = vcombine.high %v672, %v672
    %v675 = vunpack.c.l.s4 1966171168
    %v676 = vunpack.c.0.s8 %v675
    %v677 = vlaneseq
    %v678 = vshrl.u32 %v677, 7
    %v679 = vsub.s32 %v676, %v678
    %v680 = vrot.slane %v672, %v679
    %v682 = vunpack.c.l.s4 1966171168
    %v683 = vunpack.c.0.s8 %v682
    %v684 = vlaneseq
    %v685 = vshrl.u32 %v684, 7
    %v686 = vsub.s32 %v683, %v685
    %v687 = vrot.slane %v673, %v686
    %v690 = vunpack.c.l.s4 1966171168
    %v691 = vunpack.c.0.s8 %v690
    %v692 = vlaneseq
    %v693 = vshrl.u32 %v692, 7
    %v694 = vsub.s32 %v691, %v693
    %v695 = vrot.slane %v663, %v694
    %v696 = vcombine.high %v695, %v695
    %v698 = vunpack.c.l.s4 1966171168
    %v699 = vunpack.c.0.s8 %v698
    %v700 = vlaneseq
    %v701 = vshrl.u32 %v700, 7
    %v702 = vsub.s32 %v699, %v701
    %v703 = vrot.slane %v695, %v702
    %v705 = vunpack.c.l.s4 1966171168
    %v706 = vunpack.c.0.s8 %v705
    %v707 = vlaneseq
    %v708 = vshrl.u32 %v707, 7
    %v709 = vsub.s32 %v706, %v708
    %v710 = vrot.slane %v696, %v709
    %v711 = vlaneseq
    %v712 = vshrl.u32 %v711, 7
    %v713 = vsub.s32 0, %v712
    %v714 = vrot.slane %v680, %v713
    %v715 = vlaneseq
    %v716 = vshrl.u32 %v715, 7
    %v717 = vsub.s32 0, %v716
    %v718 = vrot.slane %v687, %v717
    %v721 = vmul.f32 %v450, %v714
    %v722 = vmul.f32 %v454, %v718
    %v723 = vlaneseq
    %v724 = vshrl.u32 %v723, 7
    %v725 = vsub.s32 0, %v724
    %v726 = vrot.slane %v703, %v725
    %v727 = vlaneseq
    %v728 = vshrl.u32 %v727, 7
    %v729 = vsub.s32 0, %v728
    %v730 = vrot.slane %v710, %v729
    %v733 = vsub.f32 %v451, %v726
    %v734 = vsub.f32 %v455, %v730
    %v735 = vand.u32 2147483647, %v733
    %v736 = vand.u32 2147483647, %v734
    %737 = vmatprep.subr.mxu0 0.0
    %738 = vmatpush1.msra.mxu0 %v520
    %739 = vmatprep.subr.mxu0 0.0
    %740 = vmatpush1.msra.mxu0 %v519
    %741 = vmatprep.subr.mxu0 0.0
    %742 = vmatpush1.msra.mxu0 %v518
    %743 = vmatprep.subr.mxu0 0.0
    %744 = vmatpush1.msra.mxu0 %v517
    %745 = vmatprep.subr.mxu0 0.0
    %746 = vmatpush1.msra.mxu0 %v516
    %747 = vmatprep.subr.mxu0 0.0
    %748 = vmatpush1.msra.mxu0 %v515
    %749 = vmatprep.subr.mxu0 0.0
    %750 = vmatpush1.msra.mxu0 %v514
    %751 = vmatprep.subr.mxu0 0.0
    %752 = vmatpush1.msra.mxu0 %v513
    %753 = vmatprep.subr.mxu0 0.0
    %754 = vmatpush1.msra.mxu0 %v512
    %755 = vmatprep.subr.mxu0 0.0
    %756 = vmatpush1.msra.mxu0 %v511
    %757 = vmatprep.subr.mxu0 0.0
    %758 = vmatpush1.msra.mxu0 %v510
    %759 = vmatprep.subr.mxu0 0.0
    %760 = vmatpush1.msra.mxu0 %v509
    %761 = vmatprep.subr.mxu0 0.0
    %762 = vmatpush1.msra.mxu0 %v508
    %763 = vmatprep.subr.mxu0 0.0
    %764 = vmatpush1.msra.mxu0 %v507
    %765 = vmatprep.subr.mxu0 0.0
    %766 = vmatpush1.msra.mxu0 %v506
    %767 = vmatprep.subr.mxu0 0.0
    %768 = vmatpush1.msra.mxu0 %v505
    %769 = vmatprep.subr.mxu0 0.0
    %770 = vmatpush2.msra.mxu0 0.0
    %771 = vmatprep.subr.mxu0 0.0
    %772 = vmatpush2.msra.mxu0 0.0
    %773 = vmatprep.subr.mxu0 0.0
    %774 = vmatpush2.msra.mxu0 0.0
    %775 = vmatprep.subr.mxu0 0.0
    %776 = vmatpush2.msra.mxu0 0.0
    %777 = vmatprep.subr.mxu0 0.0
    %778 = vmatpush2.msra.mxu0 0.0
    %779 = vmatprep.subr.mxu0 0.0
    %780 = vmatpush2.msra.mxu0 0.0
    %781 = vmatprep.subr.mxu0 0.0
    %782 = vmatpush2.msra.mxu0 0.0
    %783 = vmatprep.subr.mxu0 0.0
    %784 = vmatpush2.msra.mxu0 0.0
    %785 = vmatprep.subr.mxu0 0.0
    %786 = vmatpush2.msra.mxu0 0.0
    %787 = vmatprep.subr.mxu0 0.0
    %788 = vmatpush2.msra.mxu0 0.0
    %789 = vmatprep.subr.mxu0 0.0
    %790 = vmatpush2.msra.mxu0 0.0
    %791 = vmatprep.subr.mxu0 0.0
    %792 = vmatpush2.msra.mxu0 0.0
    %793 = vmatprep.subr.mxu0 0.0
    %794 = vmatpush2.msra.mxu0 0.0
    %795 = vmatprep.subr.mxu0 0.0
    %796 = vmatpush2.msra.mxu0 0.0
    %797 = vmatprep.subr.mxu0 0.0
    %798 = vmatpush2.msra.mxu0 0.0
    %799 = vmatprep.subr.mxu0 0.0
    %800 = vmatpush2.msra.mxu0 0.0
    %801 = vmatprep.mubr.f32.mxu0 0.0
    %802 = vmatmul.mubr.f32.gmra.mxu0 %v721
    %v803 = vpop.f32.mrf.mxu0
    %v804 = vadd.f32 0.0, %v803
    %v805 = vpop.f32.mrf.mxu0
    %806 = vmatprep.mubr.f32.mxu0 0.0
    %807 = vmatmul.mubr.f32.gmra.mxu0 %v722
    %v808 = vpop.f32.mrf.mxu0
    %v809 = vadd.f32 0.0, %v808
    %v810 = vpop.f32.mrf.mxu0
    %811 = vdwg.mxu0
    %812 = vmatprep.subr.mxu0 0.0
    %813 = vmatpush1.msra.mxu0 %v520
    %814 = vmatprep.subr.mxu0 0.0
    %815 = vmatpush1.msra.mxu0 %v519
    %816 = vmatprep.subr.mxu0 0.0
    %817 = vmatpush1.msra.mxu0 %v518
    %818 = vmatprep.subr.mxu0 0.0
    %819 = vmatpush1.msra.mxu0 %v517
    %820 = vmatprep.subr.mxu0 0.0
    %821 = vmatpush1.msra.mxu0 %v516
    %822 = vmatprep.subr.mxu0 0.0
    %823 = vmatpush1.msra.mxu0 %v515
    %824 = vmatprep.subr.mxu0 0.0
    %825 = vmatpush1.msra.mxu0 %v514
    %826 = vmatprep.subr.mxu0 0.0
    %827 = vmatpush1.msra.mxu0 %v513
    %828 = vmatprep.subr.mxu0 0.0
    %829 = vmatpush1.msra.mxu0 %v512
    %830 = vmatprep.subr.mxu0 0.0
    %831 = vmatpush1.msra.mxu0 %v511
    %832 = vmatprep.subr.mxu0 0.0
    %833 = vmatpush1.msra.mxu0 %v510
    %834 = vmatprep.subr.mxu0 0.0
    %835 = vmatpush1.msra.mxu0 %v509
    %836 = vmatprep.subr.mxu0 0.0
    %837 = vmatpush1.msra.mxu0 %v508
    %838 = vmatprep.subr.mxu0 0.0
    %839 = vmatpush1.msra.mxu0 %v507
    %840 = vmatprep.subr.mxu0 0.0
    %841 = vmatpush1.msra.mxu0 %v506
    %842 = vmatprep.subr.mxu0 0.0
    %843 = vmatpush1.msra.mxu0 %v505
    %844 = vmatprep.subr.mxu0 0.0
    %845 = vmatpush2.msra.mxu0 0.0
    %846 = vmatprep.subr.mxu0 0.0
    %847 = vmatpush2.msra.mxu0 0.0
    %848 = vmatprep.subr.mxu0 0.0
    %849 = vmatpush2.msra.mxu0 0.0
    %850 = vmatprep.subr.mxu0 0.0
    %851 = vmatpush2.msra.mxu0 0.0
    %852 = vmatprep.subr.mxu0 0.0
    %853 = vmatpush2.msra.mxu0 0.0
    %854 = vmatprep.subr.mxu0 0.0
    %855 = vmatpush2.msra.mxu0 0.0
    %856 = vmatprep.subr.mxu0 0.0
    %857 = vmatpush2.msra.mxu0 0.0
    %858 = vmatprep.subr.mxu0 0.0
    %859 = vmatpush2.msra.mxu0 0.0
    %860 = vmatprep.subr.mxu0 0.0
    %861 = vmatpush2.msra.mxu0 0.0
    %862 = vmatprep.subr.mxu0 0.0
    %863 = vmatpush2.msra.mxu0 0.0
    %864 = vmatprep.subr.mxu0 0.0
    %865 = vmatpush2.msra.mxu0 0.0
    %866 = vmatprep.subr.mxu0 0.0
    %867 = vmatpush2.msra.mxu0 0.0
    %868 = vmatprep.subr.mxu0 0.0
    %869 = vmatpush2.msra.mxu0 0.0
    %870 = vmatprep.subr.mxu0 0.0
    %871 = vmatpush2.msra.mxu0 0.0
    %872 = vmatprep.subr.mxu0 0.0
    %873 = vmatpush2.msra.mxu0 0.0
    %874 = vmatprep.subr.mxu0 0.0
    %875 = vmatpush2.msra.mxu0 0.0
    %876 = vmatprep.mubr.f32.mxu0 0.0
    %877 = vmatmul.mubr.f32.gmra.mxu0 %v735
    %v878 = vpop.f32.mrf.mxu0
    %v879 = vadd.f32 0.0, %v878
    %v880 = vpop.f32.mrf.mxu0
    %881 = vmatprep.mubr.f32.mxu0 0.0
    %882 = vmatmul.mubr.f32.gmra.mxu0 %v736
    %v883 = vpop.f32.mrf.mxu0
    %v884 = vadd.f32 0.0, %v883
    %v885 = vpop.f32.mrf.mxu0
    %886 = vdwg.mxu0
    %v887 = vsub.f32 0.0, %v879
    %v888 = vsub.f32 0.0, %v884
    %v889 = vtanh.pop %v804
    %v890 = vtanh.pop %v809
    %v891 = vmul.f32 %v887, %v412
    %v892 = vmul.f32 %v888, %v417
    %v893 = vadd.f32 %v891, %v462
    %v894 = vadd.f32 %v892, %v467
    %v895 = vxor.u32 %v893, 2147483648
    %v896 = vxor.u32 %v894, 2147483648
    %v897 = vmul.f32 %v895, 1.442695
    %v898 = vpow.pop %v897
    %v899 = vmul.f32 %v896, 1.442695
    %v900 = vpow.pop %v899
    %v901 = vadd.f32 %v898, 1.0
    %v902 = vadd.f32 %v900, 1.0
    %v903 = vrcp.pop %v901
    %v904 = vmul.f32 1.0, %v903
    %v905 = vrcp.pop %v902
    %v906 = vmul.f32 1.0, %v905
    %v907 = vmul.f32 %v889, %v904
    %v908 = vmul.f32 %v890, %v906
    %v909 = vmul.f32 %v907, %v449
    %v910 = vmul.f32 %v908, %v453
    %v911 = vrot.slane %v909, 4
    %v912 = vadd.f32 %v909, %v911
    %v913 = vrot.slane %v912, 2
    %v914 = vadd.f32 %v912, %v913
    %v915 = vrot.slane %v914, 1
    %v916 = vadd.f32 %v914, %v915
    %v917 = vrot.slane %v910, 4
    %v918 = vadd.f32 %v910, %v917
    %v919 = vrot.slane %v918, 2
    %v920 = vadd.f32 %v918, %v919
    %v921 = vrot.slane %v920, 1
    %v922 = vadd.f32 %v920, %v921
    %v923 = vmul.f32 %v916, 0.5
    %v924 = vmul.f32 %v922, 0.5
    %v925 = vmul.f32 %v916, 0.70710677
    %v926 = vmul.f32 %v922, 0.70710677
    %v927 = verf.f32.pop %v925
    %v928 = verf.f32.pop %v926
    %v929 = vadd.f32 %v927, 1.0
    %v930 = vadd.f32 %v928, 1.0
    %v931 = vmul.f32 %v923, %v929
    %v932 = vmul.f32 %v924, %v930
    %v933 = vld [vmem:[#allocation7] sm:$0xff]
    %v934 = vld [vmem:[#allocation7 + $0x8] sm:$0xff]
    %v935 = vld [vmem:[#allocation7 + $0x10] sm:$0xff]
    %v936 = vld [vmem:[#allocation7 + $0x18] sm:$0xff]
    %v937 = vld [vmem:[#allocation7 + $0x20] sm:$0xff]
    %v938 = vld [vmem:[#allocation7 + $0x28] sm:$0xff]
    %v939 = vld [vmem:[#allocation7 + $0x30] sm:$0xff]
    %v940 = vld [vmem:[#allocation7 + $0x38] sm:$0xff]
    %v941 = vld [vmem:[#allocation7 + $0x40] sm:$0xff]
    %v942 = vld [vmem:[#allocation7 + $0x48] sm:$0xff]
    %v943 = vld [vmem:[#allocation7 + $0x50] sm:$0xff]
    %v944 = vld [vmem:[#allocation7 + $0x58] sm:$0xff]
    %v945 = vld [vmem:[#allocation7 + $0x60] sm:$0xff]
    %v946 = vld [vmem:[#allocation7 + $0x68] sm:$0xff]
    %v947 = vld [vmem:[#allocation7 + $0x70] sm:$0xff]
    %v948 = vld [vmem:[#allocation7 + $0x78] sm:$0xff]
    %v949 = vld [vmem:[%s8] sm:$0x1]
    %v951 = vlaneseq
    %v952 = vshrl.u32 %v951, 7
    %v953 = vsub.s32 0, %v952
    %v954 = vrot.slane %v949, %v953
    %v958 = vsel %vm591, %v932, %v931
    %960 = vmatprep.subr.mxu0 0.0
    %961 = vmatpush1.msra.mxu0 %v948
    %962 = vmatprep.subr.mxu0 0.0
    %963 = vmatpush1.msra.mxu0 %v947
    %964 = vmatprep.subr.mxu0 0.0
    %965 = vmatpush1.msra.mxu0 %v946
    %966 = vmatprep.subr.mxu0 0.0
    %967 = vmatpush1.msra.mxu0 %v945
    %968 = vmatprep.subr.mxu0 0.0
    %969 = vmatpush1.msra.mxu0 %v944
    %970 = vmatprep.subr.mxu0 0.0
    %971 = vmatpush1.msra.mxu0 %v943
    %972 = vmatprep.subr.mxu0 0.0
    %973 = vmatpush1.msra.mxu0 %v942
    %974 = vmatprep.subr.mxu0 0.0
    %975 = vmatpush1.msra.mxu0 %v941
    %976 = vmatprep.subr.mxu0 0.0
    %977 = vmatpush1.msra.mxu0 %v940
    %978 = vmatprep.subr.mxu0 0.0
    %979 = vmatpush1.msra.mxu0 %v939
    %980 = vmatprep.subr.mxu0 0.0
    %981 = vmatpush1.msra.mxu0 %v938
    %982 = vmatprep.subr.mxu0 0.0
    %983 = vmatpush1.msra.mxu0 %v937
    %984 = vmatprep.subr.mxu0 0.0
    %985 = vmatpush1.msra.mxu0 %v936
    %986 = vmatprep.subr.mxu0 0.0
    %987 = vmatpush1.msra.mxu0 %v935
    %988 = vmatprep.subr.mxu0 0.0
    %989 = vmatpush1.msra.mxu0 %v934
    %990 = vmatprep.subr.mxu0 0.0
    %991 = vmatpush1.msra.mxu0 %v933
    %992 = vmatprep.subr.mxu0 0.0
    %993 = vmatpush2.msra.mxu0 0.0
    %994 = vmatprep.subr.mxu0 0.0
    %995 = vmatpush2.msra.mxu0 0.0
    %996 = vmatprep.subr.mxu0 0.0
    %997 = vmatpush2.msra.mxu0 0.0
    %998 = vmatprep.subr.mxu0 0.0
    %999 = vmatpush2.msra.mxu0 0.0
    %1000 = vmatprep.subr.mxu0 0.0
    %1001 = vmatpush2.msra.mxu0 0.0
    %1002 = vmatprep.subr.mxu0 0.0
    %1003 = vmatpush2.msra.mxu0 0.0
    %1004 = vmatprep.subr.mxu0 0.0
    %1005 = vmatpush2.msra.mxu0 0.0
    %1006 = vmatprep.subr.mxu0 0.0
    %1007 = vmatpush2.msra.mxu0 0.0
    %1008 = vmatprep.subr.mxu0 0.0
    %1009 = vmatpush2.msra.mxu0 0.0
    %1010 = vmatprep.subr.mxu0 0.0
    %1011 = vmatpush2.msra.mxu0 0.0
    %1012 = vmatprep.subr.mxu0 0.0
    %1013 = vmatpush2.msra.mxu0 0.0
    %1014 = vmatprep.subr.mxu0 0.0
    %1015 = vmatpush2.msra.mxu0 0.0
    %1016 = vmatprep.subr.mxu0 0.0
    %1017 = vmatpush2.msra.mxu0 0.0
    %1018 = vmatprep.subr.mxu0 0.0
    %1019 = vmatpush2.msra.mxu0 0.0
    %1020 = vmatprep.subr.mxu0 0.0
    %1021 = vmatpush2.msra.mxu0 0.0
    %1022 = vmatprep.subr.mxu0 0.0
    %1023 = vmatpush2.msra.mxu0 0.0
    %1024 = vmatprep.mubr.f32.mxu0 0.0
    %1025 = vmatmul.mubr.f32.gmra.mxu0 %v958
    %v1026 = vpop.f32.mrf.mxu0
    %v1027 = vadd.f32 %v954, %v1026
    %v1028 = vpop.f32.mrf.mxu0
    %1029 = vdwg.mxu0
    %v1030 = vxor.u32 %v1027, 2147483648
    %v1031 = vmul.f32 %v1030, 1.442695
    %v1032 = vpow.pop %v1031
    %v1033 = vadd.f32 %v1032, 1.0
    %v1034 = vrcp.pop %v1033
    %v1035 = vmul.f32 1.0, %v1034
    %v1036 = vmul.f32 %v1035, %v958
    %v1037 = vsub.f32 1.0, %v1035
    %v1038 = vmul.f32 %v1037, %v592
    %v1039 = vadd.f32 %v1036, %v1038
    %1040 = vmatprep.subr.mxu0 %v576
    %1041 = vmatpush1.msra.mxu0 %v575
    %1042 = vmatprep.subr.mxu0 %v574
    %1043 = vmatpush1.msra.mxu0 %v573
    %1044 = vmatprep.subr.mxu0 %v572
    %1045 = vmatpush1.msra.mxu0 %v571
    %1046 = vmatprep.subr.mxu0 %v570
    %1047 = vmatpush1.msra.mxu0 %v569
    %1048 = vmatprep.subr.mxu0 %v568
    %1049 = vmatpush1.msra.mxu0 %v567
    %1050 = vmatprep.subr.mxu0 %v566
    %1051 = vmatpush1.msra.mxu0 %v565
    %1052 = vmatprep.subr.mxu0 %v564
    %1053 = vmatpush1.msra.mxu0 %v563
    %1054 = vmatprep.subr.mxu0 %v562
    %1055 = vmatpush1.msra.mxu0 %v561
    %1056 = vmatprep.subr.mxu0 %v560
    %1057 = vmatpush1.msra.mxu0 %v559
    %1058 = vmatprep.subr.mxu0 %v558
    %1059 = vmatpush1.msra.mxu0 %v557
    %1060 = vmatprep.subr.mxu0 %v556
    %1061 = vmatpush1.msra.mxu0 %v555
    %1062 = vmatprep.subr.mxu0 %v554
    %1063 = vmatpush1.msra.mxu0 %v553
    %1064 = vmatprep.subr.mxu0 %v552
    %1065 = vmatpush1.msra.mxu0 %v551
    %1066 = vmatprep.subr.mxu0 %v550
    %1067 = vmatpush1.msra.mxu0 %v549
    %1068 = vmatprep.subr.mxu0 %v548
    %1069 = vmatpush1.msra.mxu0 %v547
    %1070 = vmatprep.subr.mxu0 %v546
    %1071 = vmatpush1.msra.mxu0 %v545
    %1072 = vmatprep.subr.mxu0 0.0
    %1073 = vmatpush2.msra.mxu0 0.0
    %1074 = vmatprep.subr.mxu0 0.0
    %1075 = vmatpush2.msra.mxu0 0.0
    %1076 = vmatprep.subr.mxu0 0.0
    %1077 = vmatpush2.msra.mxu0 0.0
    %1078 = vmatprep.subr.mxu0 0.0
    %1079 = vmatpush2.msra.mxu0 0.0
    %1080 = vmatprep.subr.mxu0 0.0
    %1081 = vmatpush2.msra.mxu0 0.0
    %1082 = vmatprep.subr.mxu0 0.0
    %1083 = vmatpush2.msra.mxu0 0.0
    %1084 = vmatprep.subr.mxu0 0.0
    %1085 = vmatpush2.msra.mxu0 0.0
    %1086 = vmatprep.subr.mxu0 0.0
    %1087 = vmatpush2.msra.mxu0 0.0
    %1088 = vmatprep.subr.mxu0 0.0
    %1089 = vmatpush2.msra.mxu0 0.0
    %1090 = vmatprep.subr.mxu0 0.0
    %1091 = vmatpush2.msra.mxu0 0.0
    %1092 = vmatprep.subr.mxu0 0.0
    %1093 = vmatpush2.msra.mxu0 0.0
    %1094 = vmatprep.subr.mxu0 0.0
    %1095 = vmatpush2.msra.mxu0 0.0
    %1096 = vmatprep.subr.mxu0 0.0
    %1097 = vmatpush2.msra.mxu0 0.0
    %1098 = vmatprep.subr.mxu0 0.0
    %1099 = vmatpush2.msra.mxu0 0.0
    %1100 = vmatprep.subr.mxu0 0.0
    %1101 = vmatpush2.msra.mxu0 0.0
    %1102 = vmatprep.subr.mxu0 0.0
    %1103 = vmatpush2.msra.mxu0 0.0
    %1104 = vmatprep.mubr.f32.mxu0 0.0
    %1105 = vmatmul.mubr.f32.gmra.mxu0 %v1039
    %v1106 = vpop.f32.mrf.mxu0
    %v1107 = vadd.f32 %v582, %v1106
    %v1108 = vpop.f32.mrf.mxu0
    %v1109 = vadd.f32 %v586, %v1108
    %1110 = vdwg.mxu0
    %v1113 = vunpack.c.l.s4 1966171168
    %v1114 = vunpack.c.0.s8 %v1113
    %v1115 = vlaneseq
    %v1116 = vshrl.u32 %v1115, 7
    %v1117 = vsub.s32 %v1114, %v1116
    %v1118 = vrot.slane %v1107, %v1117
    %v1119 = vcombine.high %v1118, %v1118
    %v1121 = vunpack.c.l.s4 1966171168
    %v1122 = vunpack.c.0.s8 %v1121
    %v1123 = vlaneseq
    %v1124 = vshrl.u32 %v1123, 7
    %v1125 = vsub.s32 %v1122, %v1124
    %v1126 = vrot.slane %v1118, %v1125
    %v1128 = vunpack.c.l.s4 1966171168
    %v1129 = vunpack.c.0.s8 %v1128
    %v1130 = vlaneseq
    %v1131 = vshrl.u32 %v1130, 7
    %v1132 = vsub.s32 %v1129, %v1131
    %v1133 = vrot.slane %v1119, %v1132
    %v1136 = vunpack.c.l.s4 1966171168
    %v1137 = vunpack.c.0.s8 %v1136
    %v1138 = vlaneseq
    %v1139 = vshrl.u32 %v1138, 7
    %v1140 = vsub.s32 %v1137, %v1139
    %v1141 = vrot.slane %v1109, %v1140
    %v1142 = vcombine.high %v1141, %v1141
    %v1144 = vunpack.c.l.s4 1966171168
    %v1145 = vunpack.c.0.s8 %v1144
    %v1146 = vlaneseq
    %v1147 = vshrl.u32 %v1146, 7
    %v1148 = vsub.s32 %v1145, %v1147
    %v1149 = vrot.slane %v1141, %v1148
    %v1151 = vunpack.c.l.s4 1966171168
    %v1152 = vunpack.c.0.s8 %v1151
    %v1153 = vlaneseq
    %v1154 = vshrl.u32 %v1153, 7
    %v1155 = vsub.s32 %v1152, %v1154
    %v1156 = vrot.slane %v1142, %v1155
    %v1157 = vlaneseq
    %v1158 = vshrl.u32 %v1157, 7
    %v1159 = vsub.s32 0, %v1158
    %v1160 = vrot.slane %v1126, %v1159
    %v1161 = vlaneseq
    %v1162 = vshrl.u32 %v1161, 7
    %v1163 = vsub.s32 0, %v1162
    %v1164 = vrot.slane %v1133, %v1163
    %v1167 = vmul.f32 %v450, %v1160
    %v1168 = vmul.f32 %v454, %v1164
    %v1169 = vlaneseq
    %v1170 = vshrl.u32 %v1169, 7
    %v1171 = vsub.s32 0, %v1170
    %v1172 = vrot.slane %v1149, %v1171
    %v1173 = vlaneseq
    %v1174 = vshrl.u32 %v1173, 7
    %v1175 = vsub.s32 0, %v1174
    %v1176 = vrot.slane %v1156, %v1175
    %v1179 = vsub.f32 %v451, %v1172
    %v1180 = vsub.f32 %v455, %v1176
    %v1181 = vand.u32 2147483647, %v1179
    %v1182 = vand.u32 2147483647, %v1180
    %1183 = vmatprep.subr.mxu0 0.0
    %1184 = vmatpush1.msra.mxu0 %v520
    %1185 = vmatprep.subr.mxu0 0.0
    %1186 = vmatpush1.msra.mxu0 %v519
    %1187 = vmatprep.subr.mxu0 0.0
    %1188 = vmatpush1.msra.mxu0 %v518
    %1189 = vmatprep.subr.mxu0 0.0
    %1190 = vmatpush1.msra.mxu0 %v517
    %1191 = vmatprep.subr.mxu0 0.0
    %1192 = vmatpush1.msra.mxu0 %v516
    %1193 = vmatprep.subr.mxu0 0.0
    %1194 = vmatpush1.msra.mxu0 %v515
    %1195 = vmatprep.subr.mxu0 0.0
    %1196 = vmatpush1.msra.mxu0 %v514
    %1197 = vmatprep.subr.mxu0 0.0
    %1198 = vmatpush1.msra.mxu0 %v513
    %1199 = vmatprep.subr.mxu0 0.0
    %1200 = vmatpush1.msra.mxu0 %v512
    %1201 = vmatprep.subr.mxu0 0.0
    %1202 = vmatpush1.msra.mxu0 %v511
    %1203 = vmatprep.subr.mxu0 0.0
    %1204 = vmatpush1.msra.mxu0 %v510
    %1205 = vmatprep.subr.mxu0 0.0
    %1206 = vmatpush1.msra.mxu0 %v509
    %1207 = vmatprep.subr.mxu0 0.0
    %1208 = vmatpush1.msra.mxu0 %v508
    %1209 = vmatprep.subr.mxu0 0.0
    %1210 = vmatpush1.msra.mxu0 %v507
    %1211 = vmatprep.subr.mxu0 0.0
    %1212 = vmatpush1.msra.mxu0 %v506
    %1213 = vmatprep.subr.mxu0 0.0
    %1214 = vmatpush1.msra.mxu0 %v505
    %1215 = vmatprep.subr.mxu0 0.0
    %1216 = vmatpush2.msra.mxu0 0.0
    %1217 = vmatprep.subr.mxu0 0.0
    %1218 = vmatpush2.msra.mxu0 0.0
    %1219 = vmatprep.subr.mxu0 0.0
    %1220 = vmatpush2.msra.mxu0 0.0
    %1221 = vmatprep.subr.mxu0 0.0
    %1222 = vmatpush2.msra.mxu0 0.0
    %1223 = vmatprep.subr.mxu0 0.0
    %1224 = vmatpush2.msra.mxu0 0.0
    %1225 = vmatprep.subr.mxu0 0.0
    %1226 = vmatpush2.msra.mxu0 0.0
    %1227 = vmatprep.subr.mxu0 0.0
    %1228 = vmatpush2.msra.mxu0 0.0
    %1229 = vmatprep.subr.mxu0 0.0
    %1230 = vmatpush2.msra.mxu0 0.0
    %1231 = vmatprep.subr.mxu0 0.0
    %1232 = vmatpush2.msra.mxu0 0.0
    %1233 = vmatprep.subr.mxu0 0.0
    %1234 = vmatpush2.msra.mxu0 0.0
    %1235 = vmatprep.subr.mxu0 0.0
    %1236 = vmatpush2.msra.mxu0 0.0
    %1237 = vmatprep.subr.mxu0 0.0
    %1238 = vmatpush2.msra.mxu0 0.0
    %1239 = vmatprep.subr.mxu0 0.0
    %1240 = vmatpush2.msra.mxu0 0.0
    %1241 = vmatprep.subr.mxu0 0.0
    %1242 = vmatpush2.msra.mxu0 0.0
    %1243 = vmatprep.subr.mxu0 0.0
    %1244 = vmatpush2.msra.mxu0 0.0
    %1245 = vmatprep.subr.mxu0 0.0
    %1246 = vmatpush2.msra.mxu0 0.0
    %1247 = vmatprep.mubr.f32.mxu0 0.0
    %1248 = vmatmul.mubr.f32.gmra.mxu0 %v1167
    %v1249 = vpop.f32.mrf.mxu0
    %v1250 = vadd.f32 0.0, %v1249
    %v1251 = vpop.f32.mrf.mxu0
    %1252 = vmatprep.mubr.f32.mxu0 0.0
    %1253 = vmatmul.mubr.f32.gmra.mxu0 %v1168
    %v1254 = vpop.f32.mrf.mxu0
    %v1255 = vadd.f32 0.0, %v1254
    %v1256 = vpop.f32.mrf.mxu0
    %1257 = vdwg.mxu0
    %1258 = vmatprep.subr.mxu0 0.0
    %1259 = vmatpush1.msra.mxu0 %v520
    %1260 = vmatprep.subr.mxu0 0.0
    %1261 = vmatpush1.msra.mxu0 %v519
    %1262 = vmatprep.subr.mxu0 0.0
    %1263 = vmatpush1.msra.mxu0 %v518
    %1264 = vmatprep.subr.mxu0 0.0
    %1265 = vmatpush1.msra.mxu0 %v517
    %1266 = vmatprep.subr.mxu0 0.0
    %1267 = vmatpush1.msra.mxu0 %v516
    %1268 = vmatprep.subr.mxu0 0.0
    %1269 = vmatpush1.msra.mxu0 %v515
    %1270 = vmatprep.subr.mxu0 0.0
    %1271 = vmatpush1.msra.mxu0 %v514
    %1272 = vmatprep.subr.mxu0 0.0
    %1273 = vmatpush1.msra.mxu0 %v513
    %1274 = vmatprep.subr.mxu0 0.0
    %1275 = vmatpush1.msra.mxu0 %v512
    %1276 = vmatprep.subr.mxu0 0.0
    %1277 = vmatpush1.msra.mxu0 %v511
    %1278 = vmatprep.subr.mxu0 0.0
    %1279 = vmatpush1.msra.mxu0 %v510
    %1280 = vmatprep.subr.mxu0 0.0
    %1281 = vmatpush1.msra.mxu0 %v509
    %1282 = vmatprep.subr.mxu0 0.0
    %1283 = vmatpush1.msra.mxu0 %v508
    %1284 = vmatprep.subr.mxu0 0.0
    %1285 = vmatpush1.msra.mxu0 %v507
    %1286 = vmatprep.subr.mxu0 0.0
    %1287 = vmatpush1.msra.mxu0 %v506
    %1288 = vmatprep.subr.mxu0 0.0
    %1289 = vmatpush1.msra.mxu0 %v505
    %1290 = vmatprep.subr.mxu0 0.0
    %1291 = vmatpush2.msra.mxu0 0.0
    %1292 = vmatprep.subr.mxu0 0.0
    %1293 = vmatpush2.msra.mxu0 0.0
    %1294 = vmatprep.subr.mxu0 0.0
    %1295 = vmatpush2.msra.mxu0 0.0
    %1296 = vmatprep.subr.mxu0 0.0
    %1297 = vmatpush2.msra.mxu0 0.0
    %1298 = vmatprep.subr.mxu0 0.0
    %1299 = vmatpush2.msra.mxu0 0.0
    %1300 = vmatprep.subr.mxu0 0.0
    %1301 = vmatpush2.msra.mxu0 0.0
    %1302 = vmatprep.subr.mxu0 0.0
    %1303 = vmatpush2.msra.mxu0 0.0
    %1304 = vmatprep.subr.mxu0 0.0
    %1305 = vmatpush2.msra.mxu0 0.0
    %1306 = vmatprep.subr.mxu0 0.0
    %1307 = vmatpush2.msra.mxu0 0.0
    %1308 = vmatprep.subr.mxu0 0.0
    %1309 = vmatpush2.msra.mxu0 0.0
    %1310 = vmatprep.subr.mxu0 0.0
    %1311 = vmatpush2.msra.mxu0 0.0
    %1312 = vmatprep.subr.mxu0 0.0
    %1313 = vmatpush2.msra.mxu0 0.0
    %1314 = vmatprep.subr.mxu0 0.0
    %1315 = vmatpush2.msra.mxu0 0.0
    %1316 = vmatprep.subr.mxu0 0.0
    %1317 = vmatpush2.msra.mxu0 0.0
    %1318 = vmatprep.subr.mxu0 0.0
    %1319 = vmatpush2.msra.mxu0 0.0
    %1320 = vmatprep.subr.mxu0 0.0
    %1321 = vmatpush2.msra.mxu0 0.0
    %1322 = vmatprep.mubr.f32.mxu0 0.0
    %1323 = vmatmul.mubr.f32.gmra.mxu0 %v1181
    %v1324 = vpop.f32.mrf.mxu0
    %v1325 = vadd.f32 0.0, %v1324
    %v1326 = vpop.f32.mrf.mxu0
    %1327 = vmatprep.mubr.f32.mxu0 0.0
    %1328 = vmatmul.mubr.f32.gmra.mxu0 %v1182
    %v1329 = vpop.f32.mrf.mxu0
    %v1330 = vadd.f32 0.0, %v1329
    %v1331 = vpop.f32.mrf.mxu0
    %1332 = vdwg.mxu0
    %v1333 = vsub.f32 0.0, %v1325
    %v1334 = vsub.f32 0.0, %v1330
    %v1335 = vtanh.pop %v1250
    %v1336 = vtanh.pop %v1255
    %v1337 = vmul.f32 %v1333, %v412
    %v1338 = vmul.f32 %v1334, %v417
    %v1339 = vadd.f32 %v1337, %v462
    %v1340 = vadd.f32 %v1338, %v467
    %v1341 = vxor.u32 %v1339, 2147483648
    %v1342 = vxor.u32 %v1340, 2147483648
    %v1343 = vmul.f32 %v1341, 1.442695
    %v1344 = vpow.pop %v1343
    %v1345 = vmul.f32 %v1342, 1.442695
    %v1346 = vpow.pop %v1345
    %v1347 = vadd.f32 %v1344, 1.0
    %v1348 = vadd.f32 %v1346, 1.0
    %v1349 = vrcp.pop %v1347
    %v1350 = vmul.f32 1.0, %v1349
    %v1351 = vrcp.pop %v1348
    %v1352 = vmul.f32 1.0, %v1351
    %v1353 = vmul.f32 %v1335, %v1350
    %v1354 = vmul.f32 %v1336, %v1352
    %v1355 = vmul.f32 %v1353, %v449
    %v1356 = vmul.f32 %v1354, %v453
    %v1357 = vrot.slane %v1355, 4
    %v1358 = vadd.f32 %v1355, %v1357
    %v1359 = vrot.slane %v1358, 2
    %v1360 = vadd.f32 %v1358, %v1359
    %v1361 = vrot.slane %v1360, 1
    %v1362 = vadd.f32 %v1360, %v1361
    %v1363 = vrot.slane %v1356, 4
    %v1364 = vadd.f32 %v1356, %v1363
    %v1365 = vrot.slane %v1364, 2
    %v1366 = vadd.f32 %v1364, %v1365
    %v1367 = vrot.slane %v1366, 1
    %v1368 = vadd.f32 %v1366, %v1367
    %v1369 = vmul.f32 %v1362, 0.5
    %v1370 = vmul.f32 %v1368, 0.5
    %v1371 = vmul.f32 %v1362, 0.70710677
    %v1372 = vmul.f32 %v1368, 0.70710677
    %v1373 = verf.f32.pop %v1371
    %v1374 = verf.f32.pop %v1372
    %v1375 = vadd.f32 %v1373, 1.0
    %v1376 = vadd.f32 %v1374, 1.0
    %v1377 = vmul.f32 %v1369, %v1375
    %v1378 = vmul.f32 %v1370, %v1376
    %v1381 = vsel %vm591, %v1378, %v1377
    %1383 = vmatprep.subr.mxu0 0.0
    %1384 = vmatpush1.msra.mxu0 %v948
    %1385 = vmatprep.subr.mxu0 0.0
    %1386 = vmatpush1.msra.mxu0 %v947
    %1387 = vmatprep.subr.mxu0 0.0
    %1388 = vmatpush1.msra.mxu0 %v946
    %1389 = vmatprep.subr.mxu0 0.0
    %1390 = vmatpush1.msra.mxu0 %v945
    %1391 = vmatprep.subr.mxu0 0.0
    %1392 = vmatpush1.msra.mxu0 %v944
    %1393 = vmatprep.subr.mxu0 0.0
    %1394 = vmatpush1.msra.mxu0 %v943
    %1395 = vmatprep.subr.mxu0 0.0
    %1396 = vmatpush1.msra.mxu0 %v942
    %1397 = vmatprep.subr.mxu0 0.0
    %1398 = vmatpush1.msra.mxu0 %v941
    %1399 = vmatprep.subr.mxu0 0.0
    %1400 = vmatpush1.msra.mxu0 %v940
    %1401 = vmatprep.subr.mxu0 0.0
    %1402 = vmatpush1.msra.mxu0 %v939
    %1403 = vmatprep.subr.mxu0 0.0
    %1404 = vmatpush1.msra.mxu0 %v938
    %1405 = vmatprep.subr.mxu0 0.0
    %1406 = vmatpush1.msra.mxu0 %v937
    %1407 = vmatprep.subr.mxu0 0.0
    %1408 = vmatpush1.msra.mxu0 %v936
    %1409 = vmatprep.subr.mxu0 0.0
    %1410 = vmatpush1.msra.mxu0 %v935
    %1411 = vmatprep.subr.mxu0 0.0
    %1412 = vmatpush1.msra.mxu0 %v934
    %1413 = vmatprep.subr.mxu0 0.0
    %1414 = vmatpush1.msra.mxu0 %v933
    %1415 = vmatprep.subr.mxu0 0.0
    %1416 = vmatpush2.msra.mxu0 0.0
    %1417 = vmatprep.subr.mxu0 0.0
    %1418 = vmatpush2.msra.mxu0 0.0
    %1419 = vmatprep.subr.mxu0 0.0
    %1420 = vmatpush2.msra.mxu0 0.0
    %1421 = vmatprep.subr.mxu0 0.0
    %1422 = vmatpush2.msra.mxu0 0.0
    %1423 = vmatprep.subr.mxu0 0.0
    %1424 = vmatpush2.msra.mxu0 0.0
    %1425 = vmatprep.subr.mxu0 0.0
    %1426 = vmatpush2.msra.mxu0 0.0
    %1427 = vmatprep.subr.mxu0 0.0
    %1428 = vmatpush2.msra.mxu0 0.0
    %1429 = vmatprep.subr.mxu0 0.0
    %1430 = vmatpush2.msra.mxu0 0.0
    %1431 = vmatprep.subr.mxu0 0.0
    %1432 = vmatpush2.msra.mxu0 0.0
    %1433 = vmatprep.subr.mxu0 0.0
    %1434 = vmatpush2.msra.mxu0 0.0
    %1435 = vmatprep.subr.mxu0 0.0
    %1436 = vmatpush2.msra.mxu0 0.0
    %1437 = vmatprep.subr.mxu0 0.0
    %1438 = vmatpush2.msra.mxu0 0.0
    %1439 = vmatprep.subr.mxu0 0.0
    %1440 = vmatpush2.msra.mxu0 0.0
    %1441 = vmatprep.subr.mxu0 0.0
    %1442 = vmatpush2.msra.mxu0 0.0
    %1443 = vmatprep.subr.mxu0 0.0
    %1444 = vmatpush2.msra.mxu0 0.0
    %1445 = vmatprep.subr.mxu0 0.0
    %1446 = vmatpush2.msra.mxu0 0.0
    %1447 = vmatprep.mubr.f32.mxu0 0.0
    %1448 = vmatmul.mubr.f32.gmra.mxu0 %v1381
    %v1449 = vpop.f32.mrf.mxu0
    %v1450 = vadd.f32 %v954, %v1449
    %v1451 = vpop.f32.mrf.mxu0
    %1452 = vdwg.mxu0
    %v1453 = vxor.u32 %v1450, 2147483648
    %v1454 = vmul.f32 %v1453, 1.442695
    %v1455 = vpow.pop %v1454
    %v1456 = vadd.f32 %v1455, 1.0
    %v1457 = vrcp.pop %v1456
    %v1458 = vmul.f32 1.0, %v1457
    %v1459 = vmul.f32 %v1458, %v1381
    %v1460 = vsub.f32 1.0, %v1458
    %v1461 = vmul.f32 %v1460, %v1039
    %v1462 = vadd.f32 %v1459, %v1461
    %1463 = vst [vmem:[#allocation11] sm:$0x3] %v1462
    // Predicated region
    $region70: #{tpu_custom_call.1} parent=1 // pred_check
      _
    $region71: #{tpu_custom_call.1} parent=1 // pred_check_branch
      %1465 = sbr.rel (0) target = $region73
    $region72: #{tpu_custom_call.1} parent=1 // pred_region
      %s1467 = ssub.s32 32, 32
      %1468 = vsyncadd [#allocation4], %s1467
      %s1470 = sshll.u32 [#allocation11], 4
      %s1471 = int_to_ptr.vmem [resolvable:$true] %s1470
      %1473 = dma.vmem_to_hbm [thread:$0]  %s1471, 32, %s12, [#allocation4]
    $region73: #{tpu_custom_call.1} parent=1 // pred_fallthru
      _
    // Predicated region
    $region74: #{tpu_custom_call.1} parent=1 // pred_check
      _
    $region75: #{tpu_custom_call.1} parent=1 // pred_check_branch
      %1475 = sbr.rel (0) target = $region77
    $region76: #{tpu_custom_call.1} parent=1 // pred_region
      %1476 = dma.done [#allocation4], 32
    $region77: #{tpu_custom_call.1} parent=1 // pred_fallthru
      _
    %1477 = vsyncpa [#allocation3], 1
    %1478 = vsyncpa [#allocation6], 1
    %1479 = vsyncpa [#allocation9], 1
    %1480 = vsyncpa [#allocation4], 1

</llo_original>
